<compile_context>
chip_gen: v5e
topology: v5e:2x2
jax: 0.10.0
libtpu: 0.0.40
codegen_flags: <defaults>
</compile_context>

<pallas_src>
import functools

import jax
import jax.numpy as jnp
from jax.experimental import pallas as pl
from jax.experimental.pallas import tpu as pltpu

BATCH = 4
SEQ = 8
D_MODEL = 128
NUM_HEADS = 8
HEAD_DIM = D_MODEL // NUM_HEADS
LN_EPS = 1e-5                      # torch.nn.LayerNorm default

MXU_DTYPE = jnp.bfloat16           # MXU operand dtype for the two big projections
TOL = 1e-2 if MXU_DTYPE == jnp.bfloat16 else 1e-4
NEG_INF = -1e30                    # large finite negative for masked scores (avoids inf-inf/NaN)


def _full_spec(shape):
    """Whole-array block for the trivial grid=(1,)."""
    n = len(shape)
    return pl.BlockSpec(shape, lambda i, _n=n: (0,) * _n)


# --------------------------- single fused kernel ---------------------------
def mha_kernel(x_ref, wqkv_ref, bqkv_ref, wo_ref, bo_ref, g_ref, b_ref, mask_ref,
               o_ref, *, batch, seq, num_heads, head_dim):
    B, S, H, D = batch, seq, num_heads, head_dim
    F = H * D
    T = B * S

    x = x_ref[...]                                                     # (T, F) f32
    mask = mask_ref[...]                                               # (T, T) additive block-diag mask

    # ---- fused Q/K/V projection: one (T,F) @ (F,3F) bf16 MXU pass, f32 accumulate ----
    # 1/sqrt(d_k) is already folded into the Wq / bq columns of wqkv/bqkv.
    qkv = (jnp.dot(x.astype(wqkv_ref.dtype), wqkv_ref[...],
                   preferred_element_type=jnp.float32)
           + bqkv_ref[...])                                            # (T, 3F) f32

    # vreg-aligned 128-lane splits (offsets 0 / F / 2F)
    q = qkv[:, 0 * F:1 * F]
    k = qkv[:, 1 * F:2 * F]
    v = qkv[:, 2 * F:3 * F]

    # ---- attention per head over lane-dense (T, T) score slabs ------------------------
    # Cross-batch pairs are removed with the additive block-diagonal mask, so a single
    # (T,D)@(D,T) dot per head replaces B*H tiny (S,D)@(D,S) batched matmuls.
    # Score / softmax math stays f32 (tiny tensors; v5e has no bf16 VPU/EUP).
    ctx_heads = []
    for h in range(H):
        cols = slice(h * D, (h + 1) * D)
        q_h, k_h, v_h = q[:, cols], k[:, cols], v[:, cols]             # (T, D) each
        s_h = jax.lax.dot_general(q_h, k_h, (((1,), (1,)), ((), ())),
                                  preferred_element_type=jnp.float32)  # (T, T) = q_h @ k_h^T
        s_h = s_h + mask
        m_h = jnp.max(s_h, axis=-1, keepdims=True)
        e_h = jnp.exp(s_h - m_h)
        w_h = e_h / jnp.sum(e_h, axis=-1, keepdims=True)               # exact softmax
        # TODO(synk): nn.Dropout(0.1) on attention weights is identity (eval mode).
        ctx_heads.append(jnp.dot(w_h, v_h,
                                 preferred_element_type=jnp.float32))  # (T, D)

    # heads re-assembled in order onto the lane axis -> lane-dense (T, F) slab
    ctx = jnp.concatenate(ctx_heads, axis=-1)                          # (T, F) f32

    # ---- output projection: a single K=F dot (head merge folded into the lane concat) ----
    y = jnp.dot(ctx.astype(wo_ref.dtype), wo_ref[...],
                preferred_element_type=jnp.float32)                    # (T, F)
    # TODO(synk): nn.Dropout(0.1) on the projected output is identity (eval mode).
    y = y + bo_ref[...] + x                                            # residual (f32 x, exact)

    # ---- LayerNorm (torch defaults, eps=1e-5, affine), single reduction pass ------------
    mean = jnp.mean(y, axis=-1, keepdims=True)
    var = jnp.mean(y * y, axis=-1, keepdims=True) - mean * mean
    yn = (y - mean) * jax.lax.rsqrt(var + LN_EPS)
    o_ref[...] = (yn * g_ref[...] + b_ref[...]).astype(o_ref.dtype)


# --------------------------------- wrapper ---------------------------------
def fuse_params(p):
    """One-time fusion of torch-style params into kernel operands
    (QKV concat, softmax scale folded into Wq/bq, MXU weights cast to bf16)."""
    scale = 1.0 / (float(HEAD_DIM) ** 0.5)
    wqkv_t = jnp.concatenate([p['wq'].T * scale, p['wk'].T, p['wv'].T], axis=1)  # (F, 3F)
    bqkv = jnp.concatenate([p['bq'] * scale, p['bk'], p['bv']])[None, :]         # (1, 3F)
    return dict(wqkv_t=wqkv_t.astype(MXU_DTYPE), bqkv=bqkv,
                wo_t=p['wo'].T.astype(MXU_DTYPE), bo=p['bo'][None, :],
                gamma=p['gamma'][None, :], beta=p['beta'][None, :])


def multi_head_attention(x, fused):
    B, S, F = x.shape
    T = B * S
    # Additive block-diagonal batch mask: 0 within a sequence, -1e30 across sequences,
    # so per-head attention can run on one lane-dense (T, T) slab instead of B tiny ones.
    tok_batch = jnp.arange(T, dtype=jnp.int32) // S
    mask = jnp.where(tok_batch[:, None] == tok_batch[None, :],
                     jnp.float32(0.0), jnp.float32(NEG_INF))           # (T, T)

    kernel = functools.partial(mha_kernel, batch=B, seq=S,
                               num_heads=NUM_HEADS, head_dim=F // NUM_HEADS)
    # NOTE: at T=32 the kernel is launch/latency bound -> keep grid=(1,).  For large B*S,
    # grid over the batch axis with dimension_semantics=("parallel",) (both TCs on v7x) once
    # the per-step work amortizes the ~0.35 us/step overhead.  VMEM footprint (~300 KiB) is
    # far below every generation's limit, so no weight tiling is needed at F=128.
    out = pl.pallas_call(
        kernel,
        grid=(1,),
        in_specs=[_full_spec((T, F)),
                  _full_spec((F, 3 * F)), _full_spec((1, 3 * F)),
                  _full_spec((F, F)), _full_spec((1, F)),
                  _full_spec((1, F)), _full_spec((1, F)),
                  _full_spec((T, T))],
        out_specs=_full_spec((T, F)),
        out_shape=jax.ShapeDtypeStruct((T, F), jnp.float32),
        compiler_params=pltpu.CompilerParams(dimension_semantics=("arbitrary",)),
    )(x.reshape(T, F), fused['wqkv_t'], fused['bqkv'], fused['wo_t'],
      fused['bo'], fused['gamma'], fused['beta'], mask)
    return out.reshape(B, S, F)


# ------------------------- deterministic parameter init -------------------------
def init_params(key):
    F = D_MODEL
    keys = jax.random.split(key, 8)
    bound = 1.0 / (F ** 0.5)  # nn.Linear default uniform(-1/sqrt(in), 1/sqrt(in))

    def lin(kw, kb):
        w = jax.random.uniform(kw, (F, F), jnp.float32, -bound, bound)  # torch (out, in)
        b = jax.random.uniform(kb, (F,), jnp.float32, -bound, bound)
        return w, b

    wq, bq = lin(keys[0], keys[1])
    wk, bk = lin(keys[2], keys[3])
    wv, bv = lin(keys[4], keys[5])
    wo, bo = lin(keys[6], keys[7])
    return dict(wq=wq, bq=bq, wk=wk, bk=bk, wv=wv, bv=bv, wo=wo, bo=bo,
                gamma=jnp.ones((F,), jnp.float32),
                beta=jnp.zeros((F,), jnp.float32))


# --------------------------- pure-JAX reference ---------------------------
def reference(x, p):
    B, S, F = x.shape
    H, D = NUM_HEADS, F // NUM_HEADS

    def proj(w, b):
        return (x @ w.T + b).reshape(B, S, H, D).transpose(0, 2, 1, 3)  # (B,H,S,D)

    q = proj(p['wq'], p['bq'])
    k = proj(p['wk'], p['bk'])
    v = proj(p['wv'], p['bv'])
    scores = jnp.einsum('bhid,bhjd->bhij', q, k) / jnp.sqrt(float(D))
    w = jax.nn.softmax(scores, axis=-1)
    ctx = jnp.einsum('bhij,bhjd->bhid', w, v).transpose(0, 2, 1, 3).reshape(B, S, F)
    y = ctx @ p['wo'].T + p['bo'] + x
    mean = jnp.mean(y, axis=-1, keepdims=True)
    var = jnp.mean((y - mean) ** 2, axis=-1, keepdims=True)
    return (y - mean) * jax.lax.rsqrt(var + LN_EPS) * p['gamma'] + p['beta']


if __name__ == "__main__":
    key = jax.random.PRNGKey(0)
    pkey, xkey = jax.random.split(key)
    params = init_params(pkey)
    fused = fuse_params(params)
    x = jax.random.normal(xkey, (BATCH, SEQ, D_MODEL), jnp.float32)

    out = jax.jit(multi_head_attention)(x, fused)
    out = jax.block_until_ready(out)

    ref = reference(x, params)
    assert out.shape == (BATCH, SEQ, D_MODEL) and out.dtype == jnp.float32
    # tolerance reflects bf16 MXU operands on the two projections (f32 accumulation,
    # f32 softmax/LayerNorm); with MXU_DTYPE = f32 this passes at 1e-4.
    assert jnp.allclose(out, ref, atol=TOL, rtol=TOL), "mismatch vs reference"
    print("KERNEL_OK")
</pallas_src>

<mosaic_0001>
module attributes {stable_mosaic.version = 11 : i64} {
  func.func @mha_kernel(%arg0: i32, %arg1: memref<32x128xf32, #tpu.memory_space<vmem>>, %arg2: memref<128x384xbf16, #tpu.memory_space<vmem>>, %arg3: memref<1x384xf32, #tpu.memory_space<vmem>>, %arg4: memref<128x128xbf16, #tpu.memory_space<vmem>>, %arg5: memref<1x128xf32, #tpu.memory_space<vmem>>, %arg6: memref<1x128xf32, #tpu.memory_space<vmem>>, %arg7: memref<1x128xf32, #tpu.memory_space<vmem>>, %arg8: memref<32x32xf32, #tpu.memory_space<vmem>>, %arg9: memref<32x128xf32, #tpu.memory_space<vmem>>) attributes {dimension_semantics = [#tpu.dimension_semantics<arbitrary>], iteration_bounds = array<i64: 1>, scalar_prefetch = 0 : i64, scratch_operands = 0 : i64, tpu.core_type = #tpu.core_type<tc>, window_params = [{pipeline_mode = #tpu.pipeline_mode<synchronous>, transform_indices = @transform_0, window_bounds = array<i64: 32, 128>}, {pipeline_mode = #tpu.pipeline_mode<synchronous>, transform_indices = @transform_1, window_bounds = array<i64: 128, 384>}, {pipeline_mode = #tpu.pipeline_mode<synchronous>, transform_indices = @transform_2, window_bounds = array<i64: 1, 384>}, {pipeline_mode = #tpu.pipeline_mode<synchronous>, transform_indices = @transform_3, window_bounds = array<i64: 128, 128>}, {pipeline_mode = #tpu.pipeline_mode<synchronous>, transform_indices = @transform_4, window_bounds = array<i64: 1, 128>}, {pipeline_mode = #tpu.pipeline_mode<synchronous>, transform_indices = @transform_5, window_bounds = array<i64: 1, 128>}, {pipeline_mode = #tpu.pipeline_mode<synchronous>, transform_indices = @transform_6, window_bounds = array<i64: 1, 128>}, {pipeline_mode = #tpu.pipeline_mode<synchronous>, transform_indices = @transform_7, window_bounds = array<i64: 32, 32>}, {pipeline_mode = #tpu.pipeline_mode<synchronous>, transform_indices = @transform_8, window_bounds = array<i64: 32, 128>}]} {
    %c0 = arith.constant 0 : index
    %c0_0 = arith.constant 0 : index
    %0 = vector.load %arg1[%c0, %c0_0] : memref<32x128xf32, #tpu.memory_space<vmem>>, vector<32x128xf32>
    %c0_1 = arith.constant 0 : index
    %c0_2 = arith.constant 0 : index
    %1 = vector.load %arg8[%c0_1, %c0_2] : memref<32x32xf32, #tpu.memory_space<vmem>>, vector<32x32xf32>
    %2 = arith.truncf %0 : vector<32x128xf32> to vector<32x128xbf16>
    %c0_3 = arith.constant 0 : index
    %c0_4 = arith.constant 0 : index
    %3 = vector.load %arg2[%c0_3, %c0_4] : memref<128x384xbf16, #tpu.memory_space<vmem>>, vector<128x384xbf16>
    %cst = arith.constant dense<0.000000e+00> : vector<32x384xf32>
    %4 = tpu.matmul %2, %3, %cst {dimension_numbers = #tpu.dot_dimension_numbers<[1], [0], [0], [1], [0, 0, 1, 1], [], []>} : vector<32x128xbf16>, vector<128x384xbf16>, vector<32x384xf32> -> vector<32x384xf32>
    %c0_5 = arith.constant 0 : index
    %c0_6 = arith.constant 0 : index
    %5 = vector.load %arg3[%c0_5, %c0_6] : memref<1x384xf32, #tpu.memory_space<vmem>>, vector<1x384xf32>
    %6 = vector.broadcast %5 : vector<1x384xf32> to vector<32x384xf32>
    %7 = arith.addf %4, %6 : vector<32x384xf32>
    %8 = vector.extract_strided_slice %7 {offsets = [0, 0], sizes = [32, 128], strides = [1, 1]} : vector<32x384xf32> to vector<32x128xf32>
    %9 = vector.extract_strided_slice %7 {offsets = [0, 128], sizes = [32, 128], strides = [1, 1]} : vector<32x384xf32> to vector<32x128xf32>
    %10 = vector.extract_strided_slice %7 {offsets = [0, 256], sizes = [32, 128], strides = [1, 1]} : vector<32x384xf32> to vector<32x128xf32>
    %11 = vector.extract_strided_slice %8 {offsets = [0, 0], sizes = [32, 16], strides = [1, 1]} : vector<32x128xf32> to vector<32x16xf32>
    %12 = vector.extract_strided_slice %9 {offsets = [0, 0], sizes = [32, 16], strides = [1, 1]} : vector<32x128xf32> to vector<32x16xf32>
    %13 = vector.extract_strided_slice %10 {offsets = [0, 0], sizes = [32, 16], strides = [1, 1]} : vector<32x128xf32> to vector<32x16xf32>
    %cst_7 = arith.constant dense<0.000000e+00> : vector<32x32xf32>
    %14 = tpu.matmul %11, %12, %cst_7 {dimension_numbers = #tpu.dot_dimension_numbers<[1], [1], [0], [0], [0, 0, 1, 0], [], []>} : vector<32x16xf32>, vector<32x16xf32>, vector<32x32xf32> -> vector<32x32xf32>
    %15 = arith.addf %14, %1 : vector<32x32xf32>
    %cst_8 = arith.constant dense<0xFF800000> : vector<32xf32>
    %16 = vector.multi_reduction <maximumf>, %15, %cst_8 [1] : vector<32x32xf32> to vector<32xf32>
    %17 = vector.shape_cast %16 : vector<32xf32> to vector<32x1xf32>
    %18 = vector.broadcast %17 : vector<32x1xf32> to vector<32x32xf32>
    %19 = arith.subf %15, %18 : vector<32x32xf32>
    %20 = math.exp %19 : vector<32x32xf32>
    %cst_9 = arith.constant dense<0.000000e+00> : vector<32xf32>
    %21 = vector.multi_reduction <add>, %20, %cst_9 [1] : vector<32x32xf32> to vector<32xf32>
    %22 = vector.shape_cast %21 : vector<32xf32> to vector<32x1xf32>
    %23 = vector.broadcast %22 : vector<32x1xf32> to vector<32x32xf32>
    %24 = arith.divf %20, %23 : vector<32x32xf32>
    %cst_10 = arith.constant dense<0.000000e+00> : vector<32x16xf32>
    %25 = tpu.matmul %24, %13, %cst_10 {dimension_numbers = #tpu.dot_dimension_numbers<[1], [0], [0], [1], [0, 0, 1, 1], [], []>} : vector<32x32xf32>, vector<32x16xf32>, vector<32x16xf32> -> vector<32x16xf32>
    %26 = vector.extract_strided_slice %8 {offsets = [0, 16], sizes = [32, 16], strides = [1, 1]} : vector<32x128xf32> to vector<32x16xf32>
    %27 = vector.extract_strided_slice %9 {offsets = [0, 16], sizes = [32, 16], strides = [1, 1]} : vector<32x128xf32> to vector<32x16xf32>
    %28 = vector.extract_strided_slice %10 {offsets = [0, 16], sizes = [32, 16], strides = [1, 1]} : vector<32x128xf32> to vector<32x16xf32>
    %cst_11 = arith.constant dense<0.000000e+00> : vector<32x32xf32>
    %29 = tpu.matmul %26, %27, %cst_11 {dimension_numbers = #tpu.dot_dimension_numbers<[1], [1], [0], [0], [0, 0, 1, 0], [], []>} : vector<32x16xf32>, vector<32x16xf32>, vector<32x32xf32> -> vector<32x32xf32>
    %30 = arith.addf %29, %1 : vector<32x32xf32>
    %cst_12 = arith.constant dense<0xFF800000> : vector<32xf32>
    %31 = vector.multi_reduction <maximumf>, %30, %cst_12 [1] : vector<32x32xf32> to vector<32xf32>
    %32 = vector.shape_cast %31 : vector<32xf32> to vector<32x1xf32>
    %33 = vector.broadcast %32 : vector<32x1xf32> to vector<32x32xf32>
    %34 = arith.subf %30, %33 : vector<32x32xf32>
    %35 = math.exp %34 : vector<32x32xf32>
    %cst_13 = arith.constant dense<0.000000e+00> : vector<32xf32>
    %36 = vector.multi_reduction <add>, %35, %cst_13 [1] : vector<32x32xf32> to vector<32xf32>
    %37 = vector.shape_cast %36 : vector<32xf32> to vector<32x1xf32>
    %38 = vector.broadcast %37 : vector<32x1xf32> to vector<32x32xf32>
    %39 = arith.divf %35, %38 : vector<32x32xf32>
    %cst_14 = arith.constant dense<0.000000e+00> : vector<32x16xf32>
    %40 = tpu.matmul %39, %28, %cst_14 {dimension_numbers = #tpu.dot_dimension_numbers<[1], [0], [0], [1], [0, 0, 1, 1], [], []>} : vector<32x32xf32>, vector<32x16xf32>, vector<32x16xf32> -> vector<32x16xf32>
    %41 = vector.extract_strided_slice %8 {offsets = [0, 32], sizes = [32, 16], strides = [1, 1]} : vector<32x128xf32> to vector<32x16xf32>
    %42 = vector.extract_strided_slice %9 {offsets = [0, 32], sizes = [32, 16], strides = [1, 1]} : vector<32x128xf32> to vector<32x16xf32>
    %43 = vector.extract_strided_slice %10 {offsets = [0, 32], sizes = [32, 16], strides = [1, 1]} : vector<32x128xf32> to vector<32x16xf32>
    %cst_15 = arith.constant dense<0.000000e+00> : vector<32x32xf32>
    %44 = tpu.matmul %41, %42, %cst_15 {dimension_numbers = #tpu.dot_dimension_numbers<[1], [1], [0], [0], [0, 0, 1, 0], [], []>} : vector<32x16xf32>, vector<32x16xf32>, vector<32x32xf32> -> vector<32x32xf32>
    %45 = arith.addf %44, %1 : vector<32x32xf32>
    %cst_16 = arith.constant dense<0xFF800000> : vector<32xf32>
    %46 = vector.multi_reduction <maximumf>, %45, %cst_16 [1] : vector<32x32xf32> to vector<32xf32>
    %47 = vector.shape_cast %46 : vector<32xf32> to vector<32x1xf32>
    %48 = vector.broadcast %47 : vector<32x1xf32> to vector<32x32xf32>
    %49 = arith.subf %45, %48 : vector<32x32xf32>
    %50 = math.exp %49 : vector<32x32xf32>
    %cst_17 = arith.constant dense<0.000000e+00> : vector<32xf32>
    %51 = vector.multi_reduction <add>, %50, %cst_17 [1] : vector<32x32xf32> to vector<32xf32>
    %52 = vector.shape_cast %51 : vector<32xf32> to vector<32x1xf32>
    %53 = vector.broadcast %52 : vector<32x1xf32> to vector<32x32xf32>
    %54 = arith.divf %50, %53 : vector<32x32xf32>
    %cst_18 = arith.constant dense<0.000000e+00> : vector<32x16xf32>
    %55 = tpu.matmul %54, %43, %cst_18 {dimension_numbers = #tpu.dot_dimension_numbers<[1], [0], [0], [1], [0, 0, 1, 1], [], []>} : vector<32x32xf32>, vector<32x16xf32>, vector<32x16xf32> -> vector<32x16xf32>
    %56 = vector.extract_strided_slice %8 {offsets = [0, 48], sizes = [32, 16], strides = [1, 1]} : vector<32x128xf32> to vector<32x16xf32>
    %57 = vector.extract_strided_slice %9 {offsets = [0, 48], sizes = [32, 16], strides = [1, 1]} : vector<32x128xf32> to vector<32x16xf32>
    %58 = vector.extract_strided_slice %10 {offsets = [0, 48], sizes = [32, 16], strides = [1, 1]} : vector<32x128xf32> to vector<32x16xf32>
    %cst_19 = arith.constant dense<0.000000e+00> : vector<32x32xf32>
    %59 = tpu.matmul %56, %57, %cst_19 {dimension_numbers = #tpu.dot_dimension_numbers<[1], [1], [0], [0], [0, 0, 1, 0], [], []>} : vector<32x16xf32>, vector<32x16xf32>, vector<32x32xf32> -> vector<32x32xf32>
    %60 = arith.addf %59, %1 : vector<32x32xf32>
    %cst_20 = arith.constant dense<0xFF800000> : vector<32xf32>
    %61 = vector.multi_reduction <maximumf>, %60, %cst_20 [1] : vector<32x32xf32> to vector<32xf32>
    %62 = vector.shape_cast %61 : vector<32xf32> to vector<32x1xf32>
    %63 = vector.broadcast %62 : vector<32x1xf32> to vector<32x32xf32>
    %64 = arith.subf %60, %63 : vector<32x32xf32>
    %65 = math.exp %64 : vector<32x32xf32>
    %cst_21 = arith.constant dense<0.000000e+00> : vector<32xf32>
    %66 = vector.multi_reduction <add>, %65, %cst_21 [1] : vector<32x32xf32> to vector<32xf32>
    %67 = vector.shape_cast %66 : vector<32xf32> to vector<32x1xf32>
    %68 = vector.broadcast %67 : vector<32x1xf32> to vector<32x32xf32>
    %69 = arith.divf %65, %68 : vector<32x32xf32>
    %cst_22 = arith.constant dense<0.000000e+00> : vector<32x16xf32>
    %70 = tpu.matmul %69, %58, %cst_22 {dimension_numbers = #tpu.dot_dimension_numbers<[1], [0], [0], [1], [0, 0, 1, 1], [], []>} : vector<32x32xf32>, vector<32x16xf32>, vector<32x16xf32> -> vector<32x16xf32>
    %71 = vector.extract_strided_slice %8 {offsets = [0, 64], sizes = [32, 16], strides = [1, 1]} : vector<32x128xf32> to vector<32x16xf32>
    %72 = vector.extract_strided_slice %9 {offsets = [0, 64], sizes = [32, 16], strides = [1, 1]} : vector<32x128xf32> to vector<32x16xf32>
    %73 = vector.extract_strided_slice %10 {offsets = [0, 64], sizes = [32, 16], strides = [1, 1]} : vector<32x128xf32> to vector<32x16xf32>
    %cst_23 = arith.constant dense<0.000000e+00> : vector<32x32xf32>
    %74 = tpu.matmul %71, %72, %cst_23 {dimension_numbers = #tpu.dot_dimension_numbers<[1], [1], [0], [0], [0, 0, 1, 0], [], []>} : vector<32x16xf32>, vector<32x16xf32>, vector<32x32xf32> -> vector<32x32xf32>
    %75 = arith.addf %74, %1 : vector<32x32xf32>
    %cst_24 = arith.constant dense<0xFF800000> : vector<32xf32>
    %76 = vector.multi_reduction <maximumf>, %75, %cst_24 [1] : vector<32x32xf32> to vector<32xf32>
    %77 = vector.shape_cast %76 : vector<32xf32> to vector<32x1xf32>
    %78 = vector.broadcast %77 : vector<32x1xf32> to vector<32x32xf32>
    %79 = arith.subf %75, %78 : vector<32x32xf32>
    %80 = math.exp %79 : vector<32x32xf32>
    %cst_25 = arith.constant dense<0.000000e+00> : vector<32xf32>
    %81 = vector.multi_reduction <add>, %80, %cst_25 [1] : vector<32x32xf32> to vector<32xf32>
    %82 = vector.shape_cast %81 : vector<32xf32> to vector<32x1xf32>
    %83 = vector.broadcast %82 : vector<32x1xf32> to vector<32x32xf32>
    %84 = arith.divf %80, %83 : vector<32x32xf32>
    %cst_26 = arith.constant dense<0.000000e+00> : vector<32x16xf32>
    %85 = tpu.matmul %84, %73, %cst_26 {dimension_numbers = #tpu.dot_dimension_numbers<[1], [0], [0], [1], [0, 0, 1, 1], [], []>} : vector<32x32xf32>, vector<32x16xf32>, vector<32x16xf32> -> vector<32x16xf32>
    %86 = vector.extract_strided_slice %8 {offsets = [0, 80], sizes = [32, 16], strides = [1, 1]} : vector<32x128xf32> to vector<32x16xf32>
    %87 = vector.extract_strided_slice %9 {offsets = [0, 80], sizes = [32, 16], strides = [1, 1]} : vector<32x128xf32> to vector<32x16xf32>
    %88 = vector.extract_strided_slice %10 {offsets = [0, 80], sizes = [32, 16], strides = [1, 1]} : vector<32x128xf32> to vector<32x16xf32>
    %cst_27 = arith.constant dense<0.000000e+00> : vector<32x32xf32>
    %89 = tpu.matmul %86, %87, %cst_27 {dimension_numbers = #tpu.dot_dimension_numbers<[1], [1], [0], [0], [0, 0, 1, 0], [], []>} : vector<32x16xf32>, vector<32x16xf32>, vector<32x32xf32> -> vector<32x32xf32>
    %90 = arith.addf %89, %1 : vector<32x32xf32>
    %cst_28 = arith.constant dense<0xFF800000> : vector<32xf32>
    %91 = vector.multi_reduction <maximumf>, %90, %cst_28 [1] : vector<32x32xf32> to vector<32xf32>
    %92 = vector.shape_cast %91 : vector<32xf32> to vector<32x1xf32>
    %93 = vector.broadcast %92 : vector<32x1xf32> to vector<32x32xf32>
    %94 = arith.subf %90, %93 : vector<32x32xf32>
    %95 = math.exp %94 : vector<32x32xf32>
    %cst_29 = arith.constant dense<0.000000e+00> : vector<32xf32>
    %96 = vector.multi_reduction <add>, %95, %cst_29 [1] : vector<32x32xf32> to vector<32xf32>
    %97 = vector.shape_cast %96 : vector<32xf32> to vector<32x1xf32>
    %98 = vector.broadcast %97 : vector<32x1xf32> to vector<32x32xf32>
    %99 = arith.divf %95, %98 : vector<32x32xf32>
    %cst_30 = arith.constant dense<0.000000e+00> : vector<32x16xf32>
    %100 = tpu.matmul %99, %88, %cst_30 {dimension_numbers = #tpu.dot_dimension_numbers<[1], [0], [0], [1], [0, 0, 1, 1], [], []>} : vector<32x32xf32>, vector<32x16xf32>, vector<32x16xf32> -> vector<32x16xf32>
    %101 = vector.extract_strided_slice %8 {offsets = [0, 96], sizes = [32, 16], strides = [1, 1]} : vector<32x128xf32> to vector<32x16xf32>
    %102 = vector.extract_strided_slice %9 {offsets = [0, 96], sizes = [32, 16], strides = [1, 1]} : vector<32x128xf32> to vector<32x16xf32>
    %103 = vector.extract_strided_slice %10 {offsets = [0, 96], sizes = [32, 16], strides = [1, 1]} : vector<32x128xf32> to vector<32x16xf32>
    %cst_31 = arith.constant dense<0.000000e+00> : vector<32x32xf32>
    %104 = tpu.matmul %101, %102, %cst_31 {dimension_numbers = #tpu.dot_dimension_numbers<[1], [1], [0], [0], [0, 0, 1, 0], [], []>} : vector<32x16xf32>, vector<32x16xf32>, vector<32x32xf32> -> vector<32x32xf32>
    %105 = arith.addf %104, %1 : vector<32x32xf32>
    %cst_32 = arith.constant dense<0xFF800000> : vector<32xf32>
    %106 = vector.multi_reduction <maximumf>, %105, %cst_32 [1] : vector<32x32xf32> to vector<32xf32>
    %107 = vector.shape_cast %106 : vector<32xf32> to vector<32x1xf32>
    %108 = vector.broadcast %107 : vector<32x1xf32> to vector<32x32xf32>
    %109 = arith.subf %105, %108 : vector<32x32xf32>
    %110 = math.exp %109 : vector<32x32xf32>
    %cst_33 = arith.constant dense<0.000000e+00> : vector<32xf32>
    %111 = vector.multi_reduction <add>, %110, %cst_33 [1] : vector<32x32xf32> to vector<32xf32>
    %112 = vector.shape_cast %111 : vector<32xf32> to vector<32x1xf32>
    %113 = vector.broadcast %112 : vector<32x1xf32> to vector<32x32xf32>
    %114 = arith.divf %110, %113 : vector<32x32xf32>
    %cst_34 = arith.constant dense<0.000000e+00> : vector<32x16xf32>
    %115 = tpu.matmul %114, %103, %cst_34 {dimension_numbers = #tpu.dot_dimension_numbers<[1], [0], [0], [1], [0, 0, 1, 1], [], []>} : vector<32x32xf32>, vector<32x16xf32>, vector<32x16xf32> -> vector<32x16xf32>
    %116 = vector.extract_strided_slice %8 {offsets = [0, 112], sizes = [32, 16], strides = [1, 1]} : vector<32x128xf32> to vector<32x16xf32>
    %117 = vector.extract_strided_slice %9 {offsets = [0, 112], sizes = [32, 16], strides = [1, 1]} : vector<32x128xf32> to vector<32x16xf32>
    %118 = vector.extract_strided_slice %10 {offsets = [0, 112], sizes = [32, 16], strides = [1, 1]} : vector<32x128xf32> to vector<32x16xf32>
    %cst_35 = arith.constant dense<0.000000e+00> : vector<32x32xf32>
    %119 = tpu.matmul %116, %117, %cst_35 {dimension_numbers = #tpu.dot_dimension_numbers<[1], [1], [0], [0], [0, 0, 1, 0], [], []>} : vector<32x16xf32>, vector<32x16xf32>, vector<32x32xf32> -> vector<32x32xf32>
    %120 = arith.addf %119, %1 : vector<32x32xf32>
    %cst_36 = arith.constant dense<0xFF800000> : vector<32xf32>
    %121 = vector.multi_reduction <maximumf>, %120, %cst_36 [1] : vector<32x32xf32> to vector<32xf32>
    %122 = vector.shape_cast %121 : vector<32xf32> to vector<32x1xf32>
    %123 = vector.broadcast %122 : vector<32x1xf32> to vector<32x32xf32>
    %124 = arith.subf %120, %123 : vector<32x32xf32>
    %125 = math.exp %124 : vector<32x32xf32>
    %cst_37 = arith.constant dense<0.000000e+00> : vector<32xf32>
    %126 = vector.multi_reduction <add>, %125, %cst_37 [1] : vector<32x32xf32> to vector<32xf32>
    %127 = vector.shape_cast %126 : vector<32xf32> to vector<32x1xf32>
    %128 = vector.broadcast %127 : vector<32x1xf32> to vector<32x32xf32>
    %129 = arith.divf %125, %128 : vector<32x32xf32>
    %cst_38 = arith.constant dense<0.000000e+00> : vector<32x16xf32>
    %130 = tpu.matmul %129, %118, %cst_38 {dimension_numbers = #tpu.dot_dimension_numbers<[1], [0], [0], [1], [0, 0, 1, 1], [], []>} : vector<32x32xf32>, vector<32x16xf32>, vector<32x16xf32> -> vector<32x16xf32>
    %131 = tpu.concatenate %25, %40, %55, %70, %85, %100, %115, %130 in 1 : vector<32x16xf32>, vector<32x16xf32>, vector<32x16xf32>, vector<32x16xf32>, vector<32x16xf32>, vector<32x16xf32>, vector<32x16xf32>, vector<32x16xf32> -> vector<32x128xf32>
    %132 = arith.truncf %131 : vector<32x128xf32> to vector<32x128xbf16>
    %c0_39 = arith.constant 0 : index
    %c0_40 = arith.constant 0 : index
    %133 = vector.load %arg4[%c0_39, %c0_40] : memref<128x128xbf16, #tpu.memory_space<vmem>>, vector<128x128xbf16>
    %cst_41 = arith.constant dense<0.000000e+00> : vector<32x128xf32>
    %134 = tpu.matmul %132, %133, %cst_41 {dimension_numbers = #tpu.dot_dimension_numbers<[1], [0], [0], [1], [0, 0, 1, 1], [], []>} : vector<32x128xbf16>, vector<128x128xbf16>, vector<32x128xf32> -> vector<32x128xf32>
    %c0_42 = arith.constant 0 : index
    %c0_43 = arith.constant 0 : index
    %135 = vector.load %arg5[%c0_42, %c0_43] : memref<1x128xf32, #tpu.memory_space<vmem>>, vector<1x128xf32>
    %136 = vector.broadcast %135 : vector<1x128xf32> to vector<32x128xf32>
    %137 = arith.addf %134, %136 : vector<32x128xf32>
    %138 = arith.addf %137, %0 : vector<32x128xf32>
    %cst_44 = arith.constant dense<0.000000e+00> : vector<32xf32>
    %139 = vector.multi_reduction <add>, %138, %cst_44 [1] : vector<32x128xf32> to vector<32xf32>
    %140 = vector.shape_cast %139 : vector<32xf32> to vector<32x1xf32>
    %cst_45 = arith.constant 1.280000e+02 : f32
    %141 = vector.broadcast %cst_45 : f32 to vector<32x1xf32>
    %142 = arith.divf %140, %141 : vector<32x1xf32>
    %143 = arith.mulf %138, %138 : vector<32x128xf32>
    %cst_46 = arith.constant dense<0.000000e+00> : vector<32xf32>
    %144 = vector.multi_reduction <add>, %143, %cst_46 [1] : vector<32x128xf32> to vector<32xf32>
    %145 = vector.shape_cast %144 : vector<32xf32> to vector<32x1xf32>
    %cst_47 = arith.constant 1.280000e+02 : f32
    %146 = vector.broadcast %cst_47 : f32 to vector<32x1xf32>
    %147 = arith.divf %145, %146 : vector<32x1xf32>
    %148 = arith.mulf %142, %142 : vector<32x1xf32>
    %149 = arith.subf %147, %148 : vector<32x1xf32>
    %150 = vector.broadcast %142 : vector<32x1xf32> to vector<32x128xf32>
    %151 = arith.subf %138, %150 : vector<32x128xf32>
    %cst_48 = arith.constant 9.99999974E-6 : f32
    %152 = vector.broadcast %cst_48 : f32 to vector<32x1xf32>
    %153 = arith.addf %149, %152 : vector<32x1xf32>
    %154 = math.rsqrt %153 : vector<32x1xf32>
    %155 = vector.broadcast %154 : vector<32x1xf32> to vector<32x128xf32>
    %156 = arith.mulf %151, %155 : vector<32x128xf32>
    %c0_49 = arith.constant 0 : index
    %c0_50 = arith.constant 0 : index
    %157 = vector.load %arg6[%c0_49, %c0_50] : memref<1x128xf32, #tpu.memory_space<vmem>>, vector<1x128xf32>
    %158 = vector.broadcast %157 : vector<1x128xf32> to vector<32x128xf32>
    %159 = arith.mulf %156, %158 : vector<32x128xf32>
    %c0_51 = arith.constant 0 : index
    %c0_52 = arith.constant 0 : index
    %160 = vector.load %arg7[%c0_51, %c0_52] : memref<1x128xf32, #tpu.memory_space<vmem>>, vector<1x128xf32>
    %161 = vector.broadcast %160 : vector<1x128xf32> to vector<32x128xf32>
    %162 = arith.addf %159, %161 : vector<32x128xf32>
    %c0_53 = arith.constant 0 : index
    %c0_54 = arith.constant 0 : index
    %163 = vector.load %arg9[%c0_53, %c0_54] : memref<32x128xf32, #tpu.memory_space<vmem>>, vector<32x128xf32>
    tpu.vector_store %arg9[%c0_53, %c0_54], %162 {strides = array<i32>} : memref<32x128xf32, #tpu.memory_space<vmem>>, vector<32x128xf32>,
    return
  }
  func.func @transform_0(%arg0: i32) -> (i32, i32) {
    %c0_i32 = arith.constant 0 : i32
    %c0_i32_0 = arith.constant 0 : i32
    %c0_i32_1 = arith.constant 0 : i32
    return %c0_i32, %c0_i32_0 : i32, i32
  }
  func.func @transform_1(%arg0: i32) -> (i32, i32) {
    %c0_i32 = arith.constant 0 : i32
    %c0_i32_0 = arith.constant 0 : i32
    %c0_i32_1 = arith.constant 0 : i32
    return %c0_i32, %c0_i32_0 : i32, i32
  }
  func.func @transform_2(%arg0: i32) -> (i32, i32) {
    %c0_i32 = arith.constant 0 : i32
    %c0_i32_0 = arith.constant 0 : i32
    %c0_i32_1 = arith.constant 0 : i32
    return %c0_i32, %c0_i32_0 : i32, i32
  }
  func.func @transform_3(%arg0: i32) -> (i32, i32) {
    %c0_i32 = arith.constant 0 : i32
    %c0_i32_0 = arith.constant 0 : i32
    %c0_i32_1 = arith.constant 0 : i32
    return %c0_i32, %c0_i32_0 : i32, i32
  }
  func.func @transform_4(%arg0: i32) -> (i32, i32) {
    %c0_i32 = arith.constant 0 : i32
    %c0_i32_0 = arith.constant 0 : i32
    %c0_i32_1 = arith.constant 0 : i32
    return %c0_i32, %c0_i32_0 : i32, i32
  }
  func.func @transform_5(%arg0: i32) -> (i32, i32) {
    %c0_i32 = arith.constant 0 : i32
    %c0_i32_0 = arith.constant 0 : i32
    %c0_i32_1 = arith.constant 0 : i32
    return %c0_i32, %c0_i32_0 : i32, i32
  }
  func.func @transform_6(%arg0: i32) -> (i32, i32) {
    %c0_i32 = arith.constant 0 : i32
    %c0_i32_0 = arith.constant 0 : i32
    %c0_i32_1 = arith.constant 0 : i32
    return %c0_i32, %c0_i32_0 : i32, i32
  }
  func.func @transform_7(%arg0: i32) -> (i32, i32) {
    %c0_i32 = arith.constant 0 : i32
    %c0_i32_0 = arith.constant 0 : i32
    %c0_i32_1 = arith.constant 0 : i32
    return %c0_i32, %c0_i32_0 : i32, i32
  }
  func.func @transform_8(%arg0: i32) -> (i32, i32) {
    %c0_i32 = arith.constant 0 : i32
    %c0_i32_0 = arith.constant 0 : i32
    %c0_i32_1 = arith.constant 0 : i32
    return %c0_i32, %c0_i32_0 : i32, i32
  }
}

</mosaic_0001>

<llo_original>
// kernel: multi_head_attention.1
$region0: #{multi_head_attention.1}
  #allocation0 [shape = 'u32[]', space=smem, size = 0x4, offset = 0x4, fixed_abs, tag = 'smem constant byte address 0x4 - core index']
  #allocation1 [shape = 'u32[72,128]{1,0:T(1,128)}', space=vmem, size = 0x9000, scoped, tag = 'internal scratch']
  %s0 = inlined_call_operand.vmem [shape: f32[32,128], index: 0, kind: input, shape index: {}]
  %s1 = inlined_call_operand.hbm [shape: bf16[128,384], index: 1, kind: input, shape index: {}]
  %s2 = inlined_call_operand.vmem [shape: f32[1,384], index: 2, kind: input, shape index: {}]
  %s3 = inlined_call_operand.hbm [shape: bf16[128,128], index: 3, kind: input, shape index: {}]
  %s4 = inlined_call_operand.vmem [shape: f32[1,128], index: 4, kind: input, shape index: {}]
  %s5 = inlined_call_operand.vmem [shape: f32[1,128], index: 5, kind: input, shape index: {}]
  %s6 = inlined_call_operand.hbm [shape: f32[1,128], index: 6, kind: input, shape index: {}]
  %s7 = inlined_call_operand.vmem [shape: f32[32,32], index: 7, kind: input, shape index: {}]
  %s8 = inlined_call_operand.hbm [shape: f32[32,128], index: 8, kind: output, shape index: {}]
  %s9 = sld [smem:[#allocation0]]
  $region54: #{multi_head_attention.1} parent=0
    _
  %s11 = ssub.s32 1, %s9
  %s12 = scalar_select 0, %s11, %s9
  $region1: #{multi_head_attention.1} parent=0
    #allocation2 [shape = 'u8[98304]{0}', space=vmem, size = 0x18000, scoped, tag = 'input window, operand 1, single buffered']
    #allocation3 [shape = 's32[1]{0}', space=sflag, size = 0x4, scoped, tag = 'scoped memory for multi_head_attention.1']
    #allocation4 [shape = 's32[1]{0}', space=sflag, size = 0x4, scoped, tag = 'scoped memory for multi_head_attention.1']
    #allocation5 [shape = 'u8[32768]{0}', space=vmem, size = 0x8000, scoped, tag = 'input window, operand 3, single buffered']
    #allocation6 [shape = 's32[1]{0}', space=sflag, size = 0x4, scoped, tag = 'scoped memory for multi_head_attention.1']
    #allocation7 [shape = 'u8[512]{0}', space=vmem, size = 0x400, scoped, tag = 'input window, operand 6, single buffered']
    #allocation8 [shape = 'u8[16384]{0}', space=vmem, size = 0x4000, scoped, tag = 'output window, operand 0, single buffered']
    %13 = vsyncpa [#allocation3], 0
    %14 = vsyncpa [#allocation6], 0
    %15 = vsyncpa [#allocation4], 0
    // Predicated region
    $region2: #{multi_head_attention.1} parent=1 // pred_check
      _
    $region3: #{multi_head_attention.1} parent=1 // pred_check_branch
      %17 = sbr.rel (0) target = $region5
    $region4: #{multi_head_attention.1} parent=1 // pred_region
      _
    $region5: #{multi_head_attention.1} parent=1 // pred_fallthru
      _
    // Predicated region
    $region6: #{multi_head_attention.1} parent=1 // pred_check
      _
    $region7: #{multi_head_attention.1} parent=1 // pred_check_branch
      %19 = sbr.rel (0) target = $region9
    $region8: #{multi_head_attention.1} parent=1 // pred_region
      %21 = vsyncadd [#allocation3], 0
      %s22 = sshll.u32 %s1, 4
      %s23 = int_to_ptr.hbm [resolvable:$true] %s22
      %s24 = sshll.u32 [#allocation2], 4
      %s25 = int_to_ptr.vmem [resolvable:$true] %s24
      %30 = dma.hbm_to_vmem [thread:$0]  %s23, 3072, %s25, [#allocation3], 192, 192, 12
    $region9: #{multi_head_attention.1} parent=1 // pred_fallthru
      _
    // Predicated region
    $region10: #{multi_head_attention.1} parent=1 // pred_check
      _
    $region11: #{multi_head_attention.1} parent=1 // pred_check_branch
      %32 = sbr.rel (0) target = $region13
    $region12: #{multi_head_attention.1} parent=1 // pred_region
      _
    $region13: #{multi_head_attention.1} parent=1 // pred_fallthru
      _
    // Predicated region
    $region14: #{multi_head_attention.1} parent=1 // pred_check
      _
    $region15: #{multi_head_attention.1} parent=1 // pred_check_branch
      %34 = sbr.rel (0) target = $region17
    $region16: #{multi_head_attention.1} parent=1 // pred_region
      %36 = vsyncadd [#allocation6], 0
      %s37 = sshll.u32 %s3, 4
      %s38 = int_to_ptr.hbm [resolvable:$true] %s37
      %s39 = sshll.u32 [#allocation5], 4
      %s40 = int_to_ptr.vmem [resolvable:$true] %s39
      %45 = dma.hbm_to_vmem [thread:$0]  %s38, 1024, %s40, [#allocation6], 64, 64, 4
    $region17: #{multi_head_attention.1} parent=1 // pred_fallthru
      _
    // Predicated region
    $region18: #{multi_head_attention.1} parent=1 // pred_check
      _
    $region19: #{multi_head_attention.1} parent=1 // pred_check_branch
      %47 = sbr.rel (0) target = $region21
    $region20: #{multi_head_attention.1} parent=1 // pred_region
      _
    $region21: #{multi_head_attention.1} parent=1 // pred_fallthru
      _
    // Predicated region
    $region22: #{multi_head_attention.1} parent=1 // pred_check
      _
    $region23: #{multi_head_attention.1} parent=1 // pred_check_branch
      %49 = sbr.rel (0) target = $region25
    $region24: #{multi_head_attention.1} parent=1 // pred_region
      _
    $region25: #{multi_head_attention.1} parent=1 // pred_fallthru
      _
    // Predicated region
    $region26: #{multi_head_attention.1} parent=1 // pred_check
      _
    $region27: #{multi_head_attention.1} parent=1 // pred_check_branch
      %51 = sbr.rel (0) target = $region29
    $region28: #{multi_head_attention.1} parent=1 // pred_region
      %53 = vsyncadd [#allocation6], 0
      %s55 = sshll.u32 %s6, 4
      %s56 = int_to_ptr.hbm [resolvable:$true] %s55
      %s57 = sshll.u32 [#allocation7], 4
      %s58 = int_to_ptr.vmem [resolvable:$true] %s57
      %60 = dma.hbm_to_vmem [thread:$0]  %s56, 16, %s58, [#allocation6]
    $region29: #{multi_head_attention.1} parent=1 // pred_fallthru
      _
    // Predicated region
    $region30: #{multi_head_attention.1} parent=1 // pred_check
      _
    $region31: #{multi_head_attention.1} parent=1 // pred_check_branch
      %62 = sbr.rel (0) target = $region33
    $region32: #{multi_head_attention.1} parent=1 // pred_region
      _
    $region33: #{multi_head_attention.1} parent=1 // pred_fallthru
      _
    // Predicated region
    $region34: #{multi_head_attention.1} parent=1 // pred_check
      _
    $region35: #{multi_head_attention.1} parent=1 // pred_check_branch
      %64 = sbr.rel (0) target = $region37
    $region36: #{multi_head_attention.1} parent=1 // pred_region
      %66 = dma.done [#allocation3], 3072
    $region37: #{multi_head_attention.1} parent=1 // pred_fallthru
      _
    // Predicated region
    $region38: #{multi_head_attention.1} parent=1 // pred_check
      _
    $region39: #{multi_head_attention.1} parent=1 // pred_check_branch
      %68 = sbr.rel (0) target = $region41
    $region40: #{multi_head_attention.1} parent=1 // pred_region
      %70 = dma.done [#allocation6], 1024
    $region41: #{multi_head_attention.1} parent=1 // pred_fallthru
      _
    // Predicated region
    $region42: #{multi_head_attention.1} parent=1 // pred_check
      _
    $region43: #{multi_head_attention.1} parent=1 // pred_check_branch
      %72 = sbr.rel (0) target = $region45
    $region44: #{multi_head_attention.1} parent=1 // pred_region
      %74 = dma.done [#allocation6], 16
    $region45: #{multi_head_attention.1} parent=1 // pred_fallthru
      _
    %v75 = vld [vmem:[%s0] sm:$0xff]
    %v76 = vld [vmem:[%s0 + $0x8] sm:$0xff]
    %v77 = vld [vmem:[%s0 + $0x10] sm:$0xff]
    %v78 = vld [vmem:[%s0 + $0x18] sm:$0xff]
    %v79 = vld [vmem:[%s7] sm:$0xff]
    %v80 = vld [vmem:[%s7 + $0x8] sm:$0xff]
    %v81 = vld [vmem:[%s7 + $0x10] sm:$0xff]
    %v82 = vld [vmem:[%s7 + $0x18] sm:$0xff]
    %v83 = vpack.c.bf16 %v76, %v75
    %v84 = vpack.c.bf16 %v78, %v77
    %v85 = vld [vmem:[#allocation2] sm:$0xff]
    %v86 = vld [vmem:[#allocation2 + $0x8] sm:$0xf]
    %v87 = vld [vmem:[#allocation2 + $0xc] sm:$0xff]
    %v88 = vld [vmem:[#allocation2 + $0x14] sm:$0xf]
    %v89 = vld [vmem:[#allocation2 + $0x18] sm:$0xff]
    %v90 = vld [vmem:[#allocation2 + $0x20] sm:$0xf]
    %v91 = vld [vmem:[#allocation2 + $0x24] sm:$0xff]
    %v92 = vld [vmem:[#allocation2 + $0x2c] sm:$0xf]
    %v93 = vld [vmem:[#allocation2 + $0x30] sm:$0xff]
    %v94 = vld [vmem:[#allocation2 + $0x38] sm:$0xf]
    %v95 = vld [vmem:[#allocation2 + $0x3c] sm:$0xff]
    %v96 = vld [vmem:[#allocation2 + $0x44] sm:$0xf]
    %v97 = vld [vmem:[#allocation2 + $0x48] sm:$0xff]
    %v98 = vld [vmem:[#allocation2 + $0x50] sm:$0xf]
    %v99 = vld [vmem:[#allocation2 + $0x54] sm:$0xff]
    %v100 = vld [vmem:[#allocation2 + $0x5c] sm:$0xf]
    %v101 = vld [vmem:[#allocation2 + $0x60] sm:$0xff]
    %v102 = vld [vmem:[#allocation2 + $0x68] sm:$0xf]
    %v103 = vld [vmem:[#allocation2 + $0x6c] sm:$0xff]
    %v104 = vld [vmem:[#allocation2 + $0x74] sm:$0xf]
    %v105 = vld [vmem:[#allocation2 + $0x78] sm:$0xff]
    %v106 = vld [vmem:[#allocation2 + $0x80] sm:$0xf]
    %v107 = vld [vmem:[#allocation2 + $0x84] sm:$0xff]
    %v108 = vld [vmem:[#allocation2 + $0x8c] sm:$0xf]
    %v109 = vld [vmem:[#allocation2 + $0x90] sm:$0xff]
    %v110 = vld [vmem:[#allocation2 + $0x98] sm:$0xf]
    %v111 = vld [vmem:[#allocation2 + $0x9c] sm:$0xff]
    %v112 = vld [vmem:[#allocation2 + $0xa4] sm:$0xf]
    %v113 = vld [vmem:[#allocation2 + $0xa8] sm:$0xff]
    %v114 = vld [vmem:[#allocation2 + $0xb0] sm:$0xf]
    %v115 = vld [vmem:[#allocation2 + $0xb4] sm:$0xff]
    %v116 = vld [vmem:[#allocation2 + $0xbc] sm:$0xf]
    %v117 = vld [vmem:[%s2] sm:$0x7]
    %v119 = vperm.slane %v117, 0
    %v120 = vperm.slane %v117, 1
    %v121 = vperm.slane %v117, 2
    %v157 = vunpack.c.l.b16 %v85
    %v158 = vunpack.c.h.b16 %v85
    %v159 = vunpack.c.l.b16 %v86
    %v160 = vunpack.c.l.b16 %v87
    %v161 = vunpack.c.h.b16 %v87
    %v162 = vunpack.c.l.b16 %v88
    %v163 = vunpack.c.l.b16 %v89
    %v164 = vunpack.c.h.b16 %v89
    %v165 = vunpack.c.l.b16 %v90
    %v166 = vunpack.c.l.b16 %v91
    %v167 = vunpack.c.h.b16 %v91
    %v168 = vunpack.c.l.b16 %v92
    %v169 = vunpack.c.l.b16 %v93
    %v170 = vunpack.c.h.b16 %v93
    %v171 = vunpack.c.l.b16 %v94
    %v172 = vunpack.c.l.b16 %v95
    %v173 = vunpack.c.h.b16 %v95
    %v174 = vunpack.c.l.b16 %v96
    %v175 = vunpack.c.l.b16 %v97
    %v176 = vunpack.c.h.b16 %v97
    %v177 = vunpack.c.l.b16 %v98
    %v178 = vunpack.c.l.b16 %v99
    %v179 = vunpack.c.h.b16 %v99
    %v180 = vunpack.c.l.b16 %v100
    %v181 = vunpack.c.l.b16 %v101
    %v182 = vunpack.c.h.b16 %v101
    %v183 = vunpack.c.l.b16 %v102
    %v184 = vunpack.c.l.b16 %v103
    %v185 = vunpack.c.h.b16 %v103
    %v186 = vunpack.c.l.b16 %v104
    %v187 = vunpack.c.l.b16 %v105
    %v188 = vunpack.c.h.b16 %v105
    %v189 = vunpack.c.l.b16 %v106
    %v190 = vunpack.c.l.b16 %v107
    %v191 = vunpack.c.h.b16 %v107
    %v192 = vunpack.c.l.b16 %v108
    %v193 = vunpack.c.l.b16 %v109
    %v194 = vunpack.c.h.b16 %v109
    %v195 = vunpack.c.l.b16 %v110
    %v196 = vunpack.c.l.b16 %v111
    %v197 = vunpack.c.h.b16 %v111
    %v198 = vunpack.c.l.b16 %v112
    %v199 = vunpack.c.l.b16 %v113
    %v200 = vunpack.c.h.b16 %v113
    %v201 = vunpack.c.l.b16 %v114
    %v202 = vunpack.c.l.b16 %v115
    %v203 = vunpack.c.h.b16 %v115
    %v204 = vunpack.c.l.b16 %v116
    %v205 = vpack.c.b16 %v160, %v157
    %v206 = vpack.c.b16 %v161, %v158
    %v207 = vpack.c.b16 %v162, %v159
    %v208 = vpack.c.b16 %v166, %v163
    %v209 = vpack.c.b16 %v167, %v164
    %v210 = vpack.c.b16 %v168, %v165
    %v211 = vpack.c.b16 %v172, %v169
    %v212 = vpack.c.b16 %v173, %v170
    %v213 = vpack.c.b16 %v174, %v171
    %v214 = vpack.c.b16 %v178, %v175
    %v215 = vpack.c.b16 %v179, %v176
    %v216 = vpack.c.b16 %v180, %v177
    %v217 = vpack.c.b16 %v184, %v181
    %v218 = vpack.c.b16 %v185, %v182
    %v219 = vpack.c.b16 %v186, %v183
    %v220 = vpack.c.b16 %v190, %v187
    %v221 = vpack.c.b16 %v191, %v188
    %v222 = vpack.c.b16 %v192, %v189
    %v223 = vpack.c.b16 %v196, %v193
    %v224 = vpack.c.b16 %v197, %v194
    %v225 = vpack.c.b16 %v198, %v195
    %v226 = vpack.c.b16 %v202, %v199
    %v227 = vpack.c.b16 %v203, %v200
    %v228 = vpack.c.b16 %v204, %v201
    %253 = vmatpush.bf16.msra.mxu0 %v226
    %254 = vmatpush.bf16.msra.mxu0 %v223
    %255 = vmatpush.bf16.msra.mxu0 %v220
    %256 = vmatpush.bf16.msra.mxu0 %v217
    %257 = vmatpush.bf16.msra.mxu0 %v214
    %258 = vmatpush.bf16.msra.mxu0 %v211
    %259 = vmatpush.bf16.msra.mxu0 %v208
    %260 = vmatpush.bf16.msra.mxu0 %v205
    %261 = vmatmul.bf16.gmra.mxu0 %v83
    %v262 = vpop.f32.mrf.mxu0
    %v263 = vadd.f32 %v119, %v262
    %v264 = vpop.f32.mrf.mxu0
    %v265 = vadd.f32 %v119, %v264
    %266 = vmatmul.bf16.gmra.mxu0 %v84
    %v267 = vpop.f32.mrf.mxu0
    %v268 = vadd.f32 %v119, %v267
    %v269 = vpop.f32.mrf.mxu0
    %v270 = vadd.f32 %v119, %v269
    %271 = vdwg.mxu0
    %272 = vmatpush.bf16.msra.mxu0 %v227
    %273 = vmatpush.bf16.msra.mxu0 %v224
    %274 = vmatpush.bf16.msra.mxu0 %v221
    %275 = vmatpush.bf16.msra.mxu0 %v218
    %276 = vmatpush.bf16.msra.mxu0 %v215
    %277 = vmatpush.bf16.msra.mxu0 %v212
    %278 = vmatpush.bf16.msra.mxu0 %v209
    %279 = vmatpush.bf16.msra.mxu0 %v206
    %280 = vmatmul.bf16.gmra.mxu0 %v83
    %v281 = vpop.f32.mrf.mxu0
    %v282 = vadd.f32 %v120, %v281
    %v283 = vpop.f32.mrf.mxu0
    %v284 = vadd.f32 %v120, %v283
    %285 = vmatmul.bf16.gmra.mxu0 %v84
    %v286 = vpop.f32.mrf.mxu0
    %v287 = vadd.f32 %v120, %v286
    %v288 = vpop.f32.mrf.mxu0
    %v289 = vadd.f32 %v120, %v288
    %290 = vdwg.mxu0
    %291 = vmatpush.bf16.msra.mxu0 %v228
    %292 = vmatpush.bf16.msra.mxu0 %v225
    %293 = vmatpush.bf16.msra.mxu0 %v222
    %294 = vmatpush.bf16.msra.mxu0 %v219
    %295 = vmatpush.bf16.msra.mxu0 %v216
    %296 = vmatpush.bf16.msra.mxu0 %v213
    %297 = vmatpush.bf16.msra.mxu0 %v210
    %298 = vmatpush.bf16.msra.mxu0 %v207
    %299 = vmatmul.bf16.gmra.mxu0 %v83
    %v300 = vpop.f32.mrf.mxu0
    %v301 = vadd.f32 %v121, %v300
    %v302 = vpop.f32.mrf.mxu0
    %v303 = vadd.f32 %v121, %v302
    %304 = vmatmul.bf16.gmra.mxu0 %v84
    %v305 = vpop.f32.mrf.mxu0
    %v306 = vadd.f32 %v121, %v305
    %v307 = vpop.f32.mrf.mxu0
    %v308 = vadd.f32 %v121, %v307
    %309 = vdwg.mxu0
    %vm310 = vcmask 130048
    %v312 = vsel %vm310, %v263, 0
    %v315 = vsel %vm310, %v265, 0
    %v318 = vsel %vm310, %v268, 0
    %v321 = vsel %vm310, %v270, 0
    %v324 = vsel %vm310, %v282, 0
    %v327 = vsel %vm310, %v284, 0
    %v330 = vsel %vm310, %v287, 0
    %v333 = vsel %vm310, %v289, 0
    %335 = vmatpush.xpose.msra.mxu0 0.0
    %336 = vmatpush.xpose.msra.mxu0 0.0
    %337 = vmatpush.xpose.msra.mxu0 0.0
    %338 = vmatpush.xpose.msra.mxu0 0.0
    %339 = vmatpush.xpose.msra.mxu0 0.0
    %340 = vmatpush.xpose.msra.mxu0 0.0
    %341 = vmatpush.xpose.msra.mxu0 0.0
    %342 = vmatpush.xpose.msra.mxu0 0.0
    %343 = vmatpush.xpose.msra.mxu0 0.0
    %344 = vmatpush.xpose.msra.mxu0 0.0
    %345 = vmatpush.xpose.msra.mxu0 0.0
    %346 = vmatpush.xpose.msra.mxu0 0.0
    %347 = vmatpush.xpose.msra.mxu0 %v333
    %348 = vmatpush.xpose.msra.mxu0 %v330
    %349 = vmatpush.xpose.msra.mxu0 %v327
    %350 = vmatpush.xpose.msra.mxu0 %v324
    %351 = vmatmul.f32.gmra.mxu0 %v312
    %v352 = vpop.f32.mrf.mxu0
    %v353 = vadd.f32 %v79, %v352
    %354 = vmatmul.f32.gmra.mxu0 %v315
    %v355 = vpop.f32.mrf.mxu0
    %v356 = vadd.f32 %v80, %v355
    %357 = vmatmul.f32.gmra.mxu0 %v318
    %v358 = vpop.f32.mrf.mxu0
    %v359 = vadd.f32 %v81, %v358
    %360 = vmatmul.f32.gmra.mxu0 %v321
    %v361 = vpop.f32.mrf.mxu0
    %v362 = vadd.f32 %v82, %v361
    %363 = vdwg.mxu0
    %vm364 = vcmask 261120
    %v365 = vsel %vm364, %v353, -inf
    %366 = vmax.xlane.f32.xlu0 %v365
    %v367 = vpop.xlane.xlu0 %366
    %v368 = vsel %vm364, %v356, -inf
    %369 = vmax.xlane.f32.xlu0 %v368
    %v370 = vpop.xlane.xlu0 %369
    %v371 = vsel %vm364, %v359, -inf
    %372 = vmax.xlane.f32.xlu0 %v371
    %v373 = vpop.xlane.xlu0 %372
    %v374 = vsel %vm364, %v362, -inf
    %375 = vmax.xlane.f32.xlu0 %v374
    %v376 = vpop.xlane.xlu0 %375
    %v377 = vsub.f32 %v353, %v367
    %v378 = vsub.f32 %v356, %v370
    %v379 = vsub.f32 %v359, %v373
    %v380 = vsub.f32 %v362, %v376
    %v381 = vmul.f32 %v377, 1.442695
    %v382 = vpow.pop %v381
    %v383 = vmul.f32 %v378, 1.442695
    %v384 = vpow.pop %v383
    %v385 = vmul.f32 %v379, 1.442695
    %v386 = vpow.pop %v385
    %v387 = vmul.f32 %v380, 1.442695
    %v388 = vpow.pop %v387
    %v389 = vsel %vm364, %v382, 0.0
    %390 = vadd.xlane.f32.xlu0 %v389
    %v391 = vpop.xlane.xlu0 %390
    %v392 = vsel %vm364, %v384, 0.0
    %393 = vadd.xlane.f32.xlu0 %v392
    %v394 = vpop.xlane.xlu0 %393
    %v395 = vsel %vm364, %v386, 0.0
    %396 = vadd.xlane.f32.xlu0 %v395
    %v397 = vpop.xlane.xlu0 %396
    %v398 = vsel %vm364, %v388, 0.0
    %399 = vadd.xlane.f32.xlu0 %v398
    %v400 = vpop.xlane.xlu0 %399
    %v401 = vrcp.pop %v391
    %v402 = vmul.f32 %v391, %v401
    %v403 = vsub.f32 1.0, %v402
    %v404 = vmul.f32 %v401, %v403
    %v405 = vadd.f32 %v401, %v404
    %vm406 = vweird.f32 %v391
    %vm407 = vweird.f32 %v401
    %vm408 = vmor %vm406, %vm407
    %v409 = vsel %vm408, %v401, %v405
    %v410 = vand.u32 2147483647, %v391
    %vm411 = vcmp.eq.f32.partialorder %v410, 8.507059e+37
    %v412 = vand.u32 %v391, 2147483648
    %v413 = vor.u32 1.1754944e-38, %v412
    %v414 = vsel %vm411, %v413, %v409
    %v415 = vmul.f32 %v382, %v414
    %v416 = vrcp.pop %v394
    %v417 = vmul.f32 %v394, %v416
    %v418 = vsub.f32 1.0, %v417
    %v419 = vmul.f32 %v416, %v418
    %v420 = vadd.f32 %v416, %v419
    %vm421 = vweird.f32 %v394
    %vm422 = vweird.f32 %v416
    %vm423 = vmor %vm421, %vm422
    %v424 = vsel %vm423, %v416, %v420
    %v425 = vand.u32 2147483647, %v394
    %vm426 = vcmp.eq.f32.partialorder %v425, 8.507059e+37
    %v427 = vand.u32 %v394, 2147483648
    %v428 = vor.u32 1.1754944e-38, %v427
    %v429 = vsel %vm426, %v428, %v424
    %v430 = vmul.f32 %v384, %v429
    %v431 = vrcp.pop %v397
    %v432 = vmul.f32 %v397, %v431
    %v433 = vsub.f32 1.0, %v432
    %v434 = vmul.f32 %v431, %v433
    %v435 = vadd.f32 %v431, %v434
    %vm436 = vweird.f32 %v397
    %vm437 = vweird.f32 %v431
    %vm438 = vmor %vm436, %vm437
    %v439 = vsel %vm438, %v431, %v435
    %v440 = vand.u32 2147483647, %v397
    %vm441 = vcmp.eq.f32.partialorder %v440, 8.507059e+37
    %v442 = vand.u32 %v397, 2147483648
    %v443 = vor.u32 1.1754944e-38, %v442
    %v444 = vsel %vm441, %v443, %v439
    %v445 = vmul.f32 %v386, %v444
    %v446 = vrcp.pop %v400
    %v447 = vmul.f32 %v400, %v446
    %v448 = vsub.f32 1.0, %v447
    %v449 = vmul.f32 %v446, %v448
    %v450 = vadd.f32 %v446, %v449
    %vm451 = vweird.f32 %v400
    %vm452 = vweird.f32 %v446
    %vm453 = vmor %vm451, %vm452
    %v454 = vsel %vm453, %v446, %v450
    %v455 = vand.u32 2147483647, %v400
    %vm456 = vcmp.eq.f32.partialorder %v455, 8.507059e+37
    %v457 = vand.u32 %v400, 2147483648
    %v458 = vor.u32 1.1754944e-38, %v457
    %v459 = vsel %vm456, %v458, %v454
    %v460 = vmul.f32 %v388, %v459
    %v462 = vsel %vm364, %v415, 0
    %v465 = vsel %vm364, %v430, 0
    %v468 = vsel %vm364, %v445, 0
    %v471 = vsel %vm364, %v460, 0
    %473 = vmatpush.msra.mxu0 0.0
    %474 = vmatpush.msra.mxu0 0.0
    %475 = vmatpush.msra.mxu0 0.0
    %476 = vmatpush.msra.mxu0 0.0
    %477 = vmatpush.msra.mxu0 0.0
    %478 = vmatpush.msra.mxu0 0.0
    %479 = vmatpush.msra.mxu0 0.0
    %480 = vmatpush.msra.mxu0 0.0
    %481 = vmatpush.msra.mxu0 0.0
    %482 = vmatpush.msra.mxu0 0.0
    %483 = vmatpush.msra.mxu0 0.0
    %484 = vmatpush.msra.mxu0 0.0
    %485 = vmatpush.msra.mxu0 %v308
    %486 = vmatpush.msra.mxu0 %v306
    %487 = vmatpush.msra.mxu0 %v303
    %488 = vmatpush.msra.mxu0 %v301
    %489 = vmatmul.f32.gmra.mxu0 %v462
    %v490 = vpop.f32.mrf.mxu0
    %v491 = vadd.f32 0.0, %v490
    %492 = vmatmul.f32.gmra.mxu0 %v465
    %v493 = vpop.f32.mrf.mxu0
    %v494 = vadd.f32 0.0, %v493
    %495 = vmatmul.f32.gmra.mxu0 %v468
    %v496 = vpop.f32.mrf.mxu0
    %v497 = vadd.f32 0.0, %v496
    %498 = vmatmul.f32.gmra.mxu0 %v471
    %v499 = vpop.f32.mrf.mxu0
    %v500 = vadd.f32 0.0, %v499
    %501 = vdwg.mxu0
    %502 = vrot.lane.b32.xlu0 %v263, 112
    %v503 = vpop.permute.xlu0 %502
    %504 = vrot.lane.b32.xlu0 %v265, 112
    %v505 = vpop.permute.xlu0 %504
    %506 = vrot.lane.b32.xlu0 %v268, 112
    %v507 = vpop.permute.xlu0 %506
    %508 = vrot.lane.b32.xlu0 %v270, 112
    %v509 = vpop.permute.xlu0 %508
    %510 = vrot.lane.b32.xlu0 %v282, 112
    %v511 = vpop.permute.xlu0 %510
    %512 = vrot.lane.b32.xlu0 %v284, 112
    %v513 = vpop.permute.xlu0 %512
    %514 = vrot.lane.b32.xlu0 %v287, 112
    %v515 = vpop.permute.xlu0 %514
    %516 = vrot.lane.b32.xlu0 %v289, 112
    %v517 = vpop.permute.xlu0 %516
    %v518 = vsel %vm310, %v503, 0
    %v520 = vsel %vm310, %v505, 0
    %v522 = vsel %vm310, %v507, 0
    %v524 = vsel %vm310, %v509, 0
    %v526 = vsel %vm310, %v511, 0
    %v528 = vsel %vm310, %v513, 0
    %v530 = vsel %vm310, %v515, 0
    %v532 = vsel %vm310, %v517, 0
    %534 = vmatpush.xpose.msra.mxu0 0.0
    %535 = vmatpush.xpose.msra.mxu0 0.0
    %536 = vmatpush.xpose.msra.mxu0 0.0
    %537 = vmatpush.xpose.msra.mxu0 0.0
    %538 = vmatpush.xpose.msra.mxu0 0.0
    %539 = vmatpush.xpose.msra.mxu0 0.0
    %540 = vmatpush.xpose.msra.mxu0 0.0
    %541 = vmatpush.xpose.msra.mxu0 0.0
    %542 = vmatpush.xpose.msra.mxu0 0.0
    %543 = vmatpush.xpose.msra.mxu0 0.0
    %544 = vmatpush.xpose.msra.mxu0 0.0
    %545 = vmatpush.xpose.msra.mxu0 0.0
    %546 = vmatpush.xpose.msra.mxu0 %v532
    %547 = vmatpush.xpose.msra.mxu0 %v530
    %548 = vmatpush.xpose.msra.mxu0 %v528
    %549 = vmatpush.xpose.msra.mxu0 %v526
    %550 = vmatmul.f32.gmra.mxu0 %v518
    %v551 = vpop.f32.mrf.mxu0
    %v552 = vadd.f32 %v79, %v551
    %553 = vmatmul.f32.gmra.mxu0 %v520
    %v554 = vpop.f32.mrf.mxu0
    %v555 = vadd.f32 %v80, %v554
    %556 = vmatmul.f32.gmra.mxu0 %v522
    %v557 = vpop.f32.mrf.mxu0
    %v558 = vadd.f32 %v81, %v557
    %559 = vmatmul.f32.gmra.mxu0 %v524
    %v560 = vpop.f32.mrf.mxu0
    %v561 = vadd.f32 %v82, %v560
    %562 = vdwg.mxu0
    %v563 = vsel %vm364, %v552, -inf
    %564 = vmax.xlane.f32.xlu0 %v563
    %v565 = vpop.xlane.xlu0 %564
    %v566 = vsel %vm364, %v555, -inf
    %567 = vmax.xlane.f32.xlu0 %v566
    %v568 = vpop.xlane.xlu0 %567
    %v569 = vsel %vm364, %v558, -inf
    %570 = vmax.xlane.f32.xlu0 %v569
    %v571 = vpop.xlane.xlu0 %570
    %v572 = vsel %vm364, %v561, -inf
    %573 = vmax.xlane.f32.xlu0 %v572
    %v574 = vpop.xlane.xlu0 %573
    %v575 = vsub.f32 %v552, %v565
    %v576 = vsub.f32 %v555, %v568
    %v577 = vsub.f32 %v558, %v571
    %v578 = vsub.f32 %v561, %v574
    %v579 = vmul.f32 %v575, 1.442695
    %v580 = vpow.pop %v579
    %v581 = vmul.f32 %v576, 1.442695
    %v582 = vpow.pop %v581
    %v583 = vmul.f32 %v577, 1.442695
    %v584 = vpow.pop %v583
    %v585 = vmul.f32 %v578, 1.442695
    %v586 = vpow.pop %v585
    %v587 = vsel %vm364, %v580, 0.0
    %588 = vadd.xlane.f32.xlu0 %v587
    %v589 = vpop.xlane.xlu0 %588
    %v590 = vsel %vm364, %v582, 0.0
    %591 = vadd.xlane.f32.xlu0 %v590
    %v592 = vpop.xlane.xlu0 %591
    %v593 = vsel %vm364, %v584, 0.0
    %594 = vadd.xlane.f32.xlu0 %v593
    %v595 = vpop.xlane.xlu0 %594
    %v596 = vsel %vm364, %v586, 0.0
    %597 = vadd.xlane.f32.xlu0 %v596
    %v598 = vpop.xlane.xlu0 %597
    %v599 = vrcp.pop %v589
    %v600 = vmul.f32 %v589, %v599
    %v601 = vsub.f32 1.0, %v600
    %v602 = vmul.f32 %v599, %v601
    %v603 = vadd.f32 %v599, %v602
    %vm604 = vweird.f32 %v589
    %vm605 = vweird.f32 %v599
    %vm606 = vmor %vm604, %vm605
    %v607 = vsel %vm606, %v599, %v603
    %v608 = vand.u32 2147483647, %v589
    %vm609 = vcmp.eq.f32.partialorder %v608, 8.507059e+37
    %v610 = vand.u32 %v589, 2147483648
    %v611 = vor.u32 1.1754944e-38, %v610
    %v612 = vsel %vm609, %v611, %v607
    %v613 = vmul.f32 %v580, %v612
    %v614 = vrcp.pop %v592
    %v615 = vmul.f32 %v592, %v614
    %v616 = vsub.f32 1.0, %v615
    %v617 = vmul.f32 %v614, %v616
    %v618 = vadd.f32 %v614, %v617
    %vm619 = vweird.f32 %v592
    %vm620 = vweird.f32 %v614
    %vm621 = vmor %vm619, %vm620
    %v622 = vsel %vm621, %v614, %v618
    %v623 = vand.u32 2147483647, %v592
    %vm624 = vcmp.eq.f32.partialorder %v623, 8.507059e+37
    %v625 = vand.u32 %v592, 2147483648
    %v626 = vor.u32 1.1754944e-38, %v625
    %v627 = vsel %vm624, %v626, %v622
    %v628 = vmul.f32 %v582, %v627
    %v629 = vrcp.pop %v595
    %v630 = vmul.f32 %v595, %v629
    %v631 = vsub.f32 1.0, %v630
    %v632 = vmul.f32 %v629, %v631
    %v633 = vadd.f32 %v629, %v632
    %vm634 = vweird.f32 %v595
    %vm635 = vweird.f32 %v629
    %vm636 = vmor %vm634, %vm635
    %v637 = vsel %vm636, %v629, %v633
    %v638 = vand.u32 2147483647, %v595
    %vm639 = vcmp.eq.f32.partialorder %v638, 8.507059e+37
    %v640 = vand.u32 %v595, 2147483648
    %v641 = vor.u32 1.1754944e-38, %v640
    %v642 = vsel %vm639, %v641, %v637
    %v643 = vmul.f32 %v584, %v642
    %v644 = vrcp.pop %v598
    %v645 = vmul.f32 %v598, %v644
    %v646 = vsub.f32 1.0, %v645
    %v647 = vmul.f32 %v644, %v646
    %v648 = vadd.f32 %v644, %v647
    %vm649 = vweird.f32 %v598
    %vm650 = vweird.f32 %v644
    %vm651 = vmor %vm649, %vm650
    %v652 = vsel %vm651, %v644, %v648
    %v653 = vand.u32 2147483647, %v598
    %vm654 = vcmp.eq.f32.partialorder %v653, 8.507059e+37
    %v655 = vand.u32 %v598, 2147483648
    %v656 = vor.u32 1.1754944e-38, %v655
    %v657 = vsel %vm654, %v656, %v652
    %v658 = vmul.f32 %v586, %v657
    %663 = vrot.lane.b32.xlu0 %v301, 112
    %v664 = vpop.permute.xlu0 %663
    %665 = vrot.lane.b32.xlu0 %v303, 112
    %v666 = vpop.permute.xlu0 %665
    %667 = vrot.lane.b32.xlu0 %v306, 112
    %v668 = vpop.permute.xlu0 %667
    %669 = vrot.lane.b32.xlu0 %v308, 112
    %v670 = vpop.permute.xlu0 %669
    %v676 = vsel %vm364, %v613, 0
    %v679 = vsel %vm364, %v628, 0
    %v682 = vsel %vm364, %v643, 0
    %v685 = vsel %vm364, %v658, 0
    %687 = vmatpush.msra.mxu0 0.0
    %688 = vmatpush.msra.mxu0 0.0
    %689 = vmatpush.msra.mxu0 0.0
    %690 = vmatpush.msra.mxu0 0.0
    %691 = vmatpush.msra.mxu0 0.0
    %692 = vmatpush.msra.mxu0 0.0
    %693 = vmatpush.msra.mxu0 0.0
    %694 = vmatpush.msra.mxu0 0.0
    %695 = vmatpush.msra.mxu0 0.0
    %696 = vmatpush.msra.mxu0 0.0
    %697 = vmatpush.msra.mxu0 0.0
    %698 = vmatpush.msra.mxu0 0.0
    %699 = vmatpush.msra.mxu0 %v670
    %700 = vmatpush.msra.mxu0 %v668
    %701 = vmatpush.msra.mxu0 %v666
    %702 = vmatpush.msra.mxu0 %v664
    %703 = vmatmul.f32.gmra.mxu0 %v676
    %v704 = vpop.f32.mrf.mxu0
    %v705 = vadd.f32 0.0, %v704
    %706 = vmatmul.f32.gmra.mxu0 %v679
    %v707 = vpop.f32.mrf.mxu0
    %v708 = vadd.f32 0.0, %v707
    %709 = vmatmul.f32.gmra.mxu0 %v682
    %v710 = vpop.f32.mrf.mxu0
    %v711 = vadd.f32 0.0, %v710
    %712 = vmatmul.f32.gmra.mxu0 %v685
    %v713 = vpop.f32.mrf.mxu0
    %v714 = vadd.f32 0.0, %v713
    %715 = vdwg.mxu0
    %716 = vrot.lane.b32.xlu0 %v263, 96
    %v717 = vpop.permute.xlu0 %716
    %718 = vrot.lane.b32.xlu0 %v265, 96
    %v719 = vpop.permute.xlu0 %718
    %720 = vrot.lane.b32.xlu0 %v268, 96
    %v721 = vpop.permute.xlu0 %720
    %722 = vrot.lane.b32.xlu0 %v270, 96
    %v723 = vpop.permute.xlu0 %722
    %724 = vrot.lane.b32.xlu0 %v282, 96
    %v725 = vpop.permute.xlu0 %724
    %726 = vrot.lane.b32.xlu0 %v284, 96
    %v727 = vpop.permute.xlu0 %726
    %728 = vrot.lane.b32.xlu0 %v287, 96
    %v729 = vpop.permute.xlu0 %728
    %730 = vrot.lane.b32.xlu0 %v289, 96
    %v731 = vpop.permute.xlu0 %730
    %v732 = vsel %vm310, %v717, 0
    %v734 = vsel %vm310, %v719, 0
    %v736 = vsel %vm310, %v721, 0
    %v738 = vsel %vm310, %v723, 0
    %v740 = vsel %vm310, %v725, 0
    %v742 = vsel %vm310, %v727, 0
    %v744 = vsel %vm310, %v729, 0
    %v746 = vsel %vm310, %v731, 0
    %748 = vmatpush.xpose.msra.mxu0 0.0
    %749 = vmatpush.xpose.msra.mxu0 0.0
    %750 = vmatpush.xpose.msra.mxu0 0.0
    %751 = vmatpush.xpose.msra.mxu0 0.0
    %752 = vmatpush.xpose.msra.mxu0 0.0
    %753 = vmatpush.xpose.msra.mxu0 0.0
    %754 = vmatpush.xpose.msra.mxu0 0.0
    %755 = vmatpush.xpose.msra.mxu0 0.0
    %756 = vmatpush.xpose.msra.mxu0 0.0
    %757 = vmatpush.xpose.msra.mxu0 0.0
    %758 = vmatpush.xpose.msra.mxu0 0.0
    %759 = vmatpush.xpose.msra.mxu0 0.0
    %760 = vmatpush.xpose.msra.mxu0 %v746
    %761 = vmatpush.xpose.msra.mxu0 %v744
    %762 = vmatpush.xpose.msra.mxu0 %v742
    %763 = vmatpush.xpose.msra.mxu0 %v740
    %764 = vmatmul.f32.gmra.mxu0 %v732
    %v765 = vpop.f32.mrf.mxu0
    %v766 = vadd.f32 %v79, %v765
    %767 = vmatmul.f32.gmra.mxu0 %v734
    %v768 = vpop.f32.mrf.mxu0
    %v769 = vadd.f32 %v80, %v768
    %770 = vmatmul.f32.gmra.mxu0 %v736
    %v771 = vpop.f32.mrf.mxu0
    %v772 = vadd.f32 %v81, %v771
    %773 = vmatmul.f32.gmra.mxu0 %v738
    %v774 = vpop.f32.mrf.mxu0
    %v775 = vadd.f32 %v82, %v774
    %776 = vdwg.mxu0
    %v777 = vsel %vm364, %v766, -inf
    %778 = vmax.xlane.f32.xlu0 %v777
    %v779 = vpop.xlane.xlu0 %778
    %v780 = vsel %vm364, %v769, -inf
    %781 = vmax.xlane.f32.xlu0 %v780
    %v782 = vpop.xlane.xlu0 %781
    %v783 = vsel %vm364, %v772, -inf
    %784 = vmax.xlane.f32.xlu0 %v783
    %v785 = vpop.xlane.xlu0 %784
    %v786 = vsel %vm364, %v775, -inf
    %787 = vmax.xlane.f32.xlu0 %v786
    %v788 = vpop.xlane.xlu0 %787
    %v789 = vsub.f32 %v766, %v779
    %v790 = vsub.f32 %v769, %v782
    %v791 = vsub.f32 %v772, %v785
    %v792 = vsub.f32 %v775, %v788
    %v793 = vmul.f32 %v789, 1.442695
    %v794 = vpow.pop %v793
    %v795 = vmul.f32 %v790, 1.442695
    %v796 = vpow.pop %v795
    %v797 = vmul.f32 %v791, 1.442695
    %v798 = vpow.pop %v797
    %v799 = vmul.f32 %v792, 1.442695
    %v800 = vpow.pop %v799
    %v801 = vsel %vm364, %v794, 0.0
    %802 = vadd.xlane.f32.xlu0 %v801
    %v803 = vpop.xlane.xlu0 %802
    %v804 = vsel %vm364, %v796, 0.0
    %805 = vadd.xlane.f32.xlu0 %v804
    %v806 = vpop.xlane.xlu0 %805
    %v807 = vsel %vm364, %v798, 0.0
    %808 = vadd.xlane.f32.xlu0 %v807
    %v809 = vpop.xlane.xlu0 %808
    %v810 = vsel %vm364, %v800, 0.0
    %811 = vadd.xlane.f32.xlu0 %v810
    %v812 = vpop.xlane.xlu0 %811
    %v813 = vrcp.pop %v803
    %v814 = vmul.f32 %v803, %v813
    %v815 = vsub.f32 1.0, %v814
    %v816 = vmul.f32 %v813, %v815
    %v817 = vadd.f32 %v813, %v816
    %vm818 = vweird.f32 %v803
    %vm819 = vweird.f32 %v813
    %vm820 = vmor %vm818, %vm819
    %v821 = vsel %vm820, %v813, %v817
    %v822 = vand.u32 2147483647, %v803
    %vm823 = vcmp.eq.f32.partialorder %v822, 8.507059e+37
    %v824 = vand.u32 %v803, 2147483648
    %v825 = vor.u32 1.1754944e-38, %v824
    %v826 = vsel %vm823, %v825, %v821
    %v827 = vmul.f32 %v794, %v826
    %v828 = vrcp.pop %v806
    %v829 = vmul.f32 %v806, %v828
    %v830 = vsub.f32 1.0, %v829
    %v831 = vmul.f32 %v828, %v830
    %v832 = vadd.f32 %v828, %v831
    %vm833 = vweird.f32 %v806
    %vm834 = vweird.f32 %v828
    %vm835 = vmor %vm833, %vm834
    %v836 = vsel %vm835, %v828, %v832
    %v837 = vand.u32 2147483647, %v806
    %vm838 = vcmp.eq.f32.partialorder %v837, 8.507059e+37
    %v839 = vand.u32 %v806, 2147483648
    %v840 = vor.u32 1.1754944e-38, %v839
    %v841 = vsel %vm838, %v840, %v836
    %v842 = vmul.f32 %v796, %v841
    %v843 = vrcp.pop %v809
    %v844 = vmul.f32 %v809, %v843
    %v845 = vsub.f32 1.0, %v844
    %v846 = vmul.f32 %v843, %v845
    %v847 = vadd.f32 %v843, %v846
    %vm848 = vweird.f32 %v809
    %vm849 = vweird.f32 %v843
    %vm850 = vmor %vm848, %vm849
    %v851 = vsel %vm850, %v843, %v847
    %v852 = vand.u32 2147483647, %v809
    %vm853 = vcmp.eq.f32.partialorder %v852, 8.507059e+37
    %v854 = vand.u32 %v809, 2147483648
    %v855 = vor.u32 1.1754944e-38, %v854
    %v856 = vsel %vm853, %v855, %v851
    %v857 = vmul.f32 %v798, %v856
    %v858 = vrcp.pop %v812
    %v859 = vmul.f32 %v812, %v858
    %v860 = vsub.f32 1.0, %v859
    %v861 = vmul.f32 %v858, %v860
    %v862 = vadd.f32 %v858, %v861
    %vm863 = vweird.f32 %v812
    %vm864 = vweird.f32 %v858
    %vm865 = vmor %vm863, %vm864
    %v866 = vsel %vm865, %v858, %v862
    %v867 = vand.u32 2147483647, %v812
    %vm868 = vcmp.eq.f32.partialorder %v867, 8.507059e+37
    %v869 = vand.u32 %v812, 2147483648
    %v870 = vor.u32 1.1754944e-38, %v869
    %v871 = vsel %vm868, %v870, %v866
    %v872 = vmul.f32 %v800, %v871
    %873 = vrot.lane.b32.xlu0 %v301, 96
    %v874 = vpop.permute.xlu0 %873
    %875 = vrot.lane.b32.xlu0 %v303, 96
    %v876 = vpop.permute.xlu0 %875
    %877 = vrot.lane.b32.xlu0 %v306, 96
    %v878 = vpop.permute.xlu0 %877
    %879 = vrot.lane.b32.xlu0 %v308, 96
    %v880 = vpop.permute.xlu0 %879
    %v886 = vsel %vm364, %v827, 0
    %v889 = vsel %vm364, %v842, 0
    %v892 = vsel %vm364, %v857, 0
    %v895 = vsel %vm364, %v872, 0
    %897 = vmatpush.msra.mxu0 0.0
    %898 = vmatpush.msra.mxu0 0.0
    %899 = vmatpush.msra.mxu0 0.0
    %900 = vmatpush.msra.mxu0 0.0
    %901 = vmatpush.msra.mxu0 0.0
    %902 = vmatpush.msra.mxu0 0.0
    %903 = vmatpush.msra.mxu0 0.0
    %904 = vmatpush.msra.mxu0 0.0
    %905 = vmatpush.msra.mxu0 0.0
    %906 = vmatpush.msra.mxu0 0.0
    %907 = vmatpush.msra.mxu0 0.0
    %908 = vmatpush.msra.mxu0 0.0
    %909 = vmatpush.msra.mxu0 %v880
    %910 = vmatpush.msra.mxu0 %v878
    %911 = vmatpush.msra.mxu0 %v876
    %912 = vmatpush.msra.mxu0 %v874
    %913 = vmatmul.f32.gmra.mxu0 %v886
    %v914 = vpop.f32.mrf.mxu0
    %v915 = vadd.f32 0.0, %v914
    %916 = vmatmul.f32.gmra.mxu0 %v889
    %v917 = vpop.f32.mrf.mxu0
    %v918 = vadd.f32 0.0, %v917
    %919 = vmatmul.f32.gmra.mxu0 %v892
    %v920 = vpop.f32.mrf.mxu0
    %v921 = vadd.f32 0.0, %v920
    %922 = vmatmul.f32.gmra.mxu0 %v895
    %v923 = vpop.f32.mrf.mxu0
    %v924 = vadd.f32 0.0, %v923
    %925 = vdwg.mxu0
    %926 = vrot.lane.b32.xlu0 %v263, 80
    %v927 = vpop.permute.xlu0 %926
    %928 = vrot.lane.b32.xlu0 %v265, 80
    %v929 = vpop.permute.xlu0 %928
    %930 = vrot.lane.b32.xlu0 %v268, 80
    %v931 = vpop.permute.xlu0 %930
    %932 = vrot.lane.b32.xlu0 %v270, 80
    %v933 = vpop.permute.xlu0 %932
    %934 = vrot.lane.b32.xlu0 %v282, 80
    %v935 = vpop.permute.xlu0 %934
    %936 = vrot.lane.b32.xlu0 %v284, 80
    %v937 = vpop.permute.xlu0 %936
    %938 = vrot.lane.b32.xlu0 %v287, 80
    %v939 = vpop.permute.xlu0 %938
    %940 = vrot.lane.b32.xlu0 %v289, 80
    %v941 = vpop.permute.xlu0 %940
    %v942 = vsel %vm310, %v927, 0
    %v944 = vsel %vm310, %v929, 0
    %v946 = vsel %vm310, %v931, 0
    %v948 = vsel %vm310, %v933, 0
    %v950 = vsel %vm310, %v935, 0
    %v952 = vsel %vm310, %v937, 0
    %v954 = vsel %vm310, %v939, 0
    %v956 = vsel %vm310, %v941, 0
    %958 = vmatpush.xpose.msra.mxu0 0.0
    %959 = vmatpush.xpose.msra.mxu0 0.0
    %960 = vmatpush.xpose.msra.mxu0 0.0
    %961 = vmatpush.xpose.msra.mxu0 0.0
    %962 = vmatpush.xpose.msra.mxu0 0.0
    %963 = vmatpush.xpose.msra.mxu0 0.0
    %964 = vmatpush.xpose.msra.mxu0 0.0
    %965 = vmatpush.xpose.msra.mxu0 0.0
    %966 = vmatpush.xpose.msra.mxu0 0.0
    %967 = vmatpush.xpose.msra.mxu0 0.0
    %968 = vmatpush.xpose.msra.mxu0 0.0
    %969 = vmatpush.xpose.msra.mxu0 0.0
    %970 = vmatpush.xpose.msra.mxu0 %v956
    %971 = vmatpush.xpose.msra.mxu0 %v954
    %972 = vmatpush.xpose.msra.mxu0 %v952
    %973 = vmatpush.xpose.msra.mxu0 %v950
    %974 = vmatmul.f32.gmra.mxu0 %v942
    %v975 = vpop.f32.mrf.mxu0
    %v976 = vadd.f32 %v79, %v975
    %977 = vmatmul.f32.gmra.mxu0 %v944
    %v978 = vpop.f32.mrf.mxu0
    %v979 = vadd.f32 %v80, %v978
    %980 = vmatmul.f32.gmra.mxu0 %v946
    %v981 = vpop.f32.mrf.mxu0
    %v982 = vadd.f32 %v81, %v981
    %983 = vmatmul.f32.gmra.mxu0 %v948
    %v984 = vpop.f32.mrf.mxu0
    %v985 = vadd.f32 %v82, %v984
    %986 = vdwg.mxu0
    %v987 = vsel %vm364, %v976, -inf
    %988 = vmax.xlane.f32.xlu0 %v987
    %v989 = vpop.xlane.xlu0 %988
    %v990 = vsel %vm364, %v979, -inf
    %991 = vmax.xlane.f32.xlu0 %v990
    %v992 = vpop.xlane.xlu0 %991
    %v993 = vsel %vm364, %v982, -inf
    %994 = vmax.xlane.f32.xlu0 %v993
    %v995 = vpop.xlane.xlu0 %994
    %v996 = vsel %vm364, %v985, -inf
    %997 = vmax.xlane.f32.xlu0 %v996
    %v998 = vpop.xlane.xlu0 %997
    %v999 = vsub.f32 %v976, %v989
    %v1000 = vsub.f32 %v979, %v992
    %v1001 = vsub.f32 %v982, %v995
    %v1002 = vsub.f32 %v985, %v998
    %v1003 = vmul.f32 %v999, 1.442695
    %v1004 = vpow.pop %v1003
    %v1005 = vmul.f32 %v1000, 1.442695
    %v1006 = vpow.pop %v1005
    %v1007 = vmul.f32 %v1001, 1.442695
    %v1008 = vpow.pop %v1007
    %v1009 = vmul.f32 %v1002, 1.442695
    %v1010 = vpow.pop %v1009
    %v1011 = vsel %vm364, %v1004, 0.0
    %1012 = vadd.xlane.f32.xlu0 %v1011
    %v1013 = vpop.xlane.xlu0 %1012
    %v1014 = vsel %vm364, %v1006, 0.0
    %1015 = vadd.xlane.f32.xlu0 %v1014
    %v1016 = vpop.xlane.xlu0 %1015
    %v1017 = vsel %vm364, %v1008, 0.0
    %1018 = vadd.xlane.f32.xlu0 %v1017
    %v1019 = vpop.xlane.xlu0 %1018
    %v1020 = vsel %vm364, %v1010, 0.0
    %1021 = vadd.xlane.f32.xlu0 %v1020
    %v1022 = vpop.xlane.xlu0 %1021
    %v1023 = vrcp.pop %v1013
    %v1024 = vmul.f32 %v1013, %v1023
    %v1025 = vsub.f32 1.0, %v1024
    %v1026 = vmul.f32 %v1023, %v1025
    %v1027 = vadd.f32 %v1023, %v1026
    %vm1028 = vweird.f32 %v1013
    %vm1029 = vweird.f32 %v1023
    %vm1030 = vmor %vm1028, %vm1029
    %v1031 = vsel %vm1030, %v1023, %v1027
    %v1032 = vand.u32 2147483647, %v1013
    %vm1033 = vcmp.eq.f32.partialorder %v1032, 8.507059e+37
    %v1034 = vand.u32 %v1013, 2147483648
    %v1035 = vor.u32 1.1754944e-38, %v1034
    %v1036 = vsel %vm1033, %v1035, %v1031
    %v1037 = vmul.f32 %v1004, %v1036
    %v1038 = vrcp.pop %v1016
    %v1039 = vmul.f32 %v1016, %v1038
    %v1040 = vsub.f32 1.0, %v1039
    %v1041 = vmul.f32 %v1038, %v1040
    %v1042 = vadd.f32 %v1038, %v1041
    %vm1043 = vweird.f32 %v1016
    %vm1044 = vweird.f32 %v1038
    %vm1045 = vmor %vm1043, %vm1044
    %v1046 = vsel %vm1045, %v1038, %v1042
    %v1047 = vand.u32 2147483647, %v1016
    %vm1048 = vcmp.eq.f32.partialorder %v1047, 8.507059e+37
    %v1049 = vand.u32 %v1016, 2147483648
    %v1050 = vor.u32 1.1754944e-38, %v1049
    %v1051 = vsel %vm1048, %v1050, %v1046
    %v1052 = vmul.f32 %v1006, %v1051
    %v1053 = vrcp.pop %v1019
    %v1054 = vmul.f32 %v1019, %v1053
    %v1055 = vsub.f32 1.0, %v1054
    %v1056 = vmul.f32 %v1053, %v1055
    %v1057 = vadd.f32 %v1053, %v1056
    %vm1058 = vweird.f32 %v1019
    %vm1059 = vweird.f32 %v1053
    %vm1060 = vmor %vm1058, %vm1059
    %v1061 = vsel %vm1060, %v1053, %v1057
    %v1062 = vand.u32 2147483647, %v1019
    %vm1063 = vcmp.eq.f32.partialorder %v1062, 8.507059e+37
    %v1064 = vand.u32 %v1019, 2147483648
    %v1065 = vor.u32 1.1754944e-38, %v1064
    %v1066 = vsel %vm1063, %v1065, %v1061
    %v1067 = vmul.f32 %v1008, %v1066
    %v1068 = vrcp.pop %v1022
    %v1069 = vmul.f32 %v1022, %v1068
    %v1070 = vsub.f32 1.0, %v1069
    %v1071 = vmul.f32 %v1068, %v1070
    %v1072 = vadd.f32 %v1068, %v1071
    %vm1073 = vweird.f32 %v1022
    %vm1074 = vweird.f32 %v1068
    %vm1075 = vmor %vm1073, %vm1074
    %v1076 = vsel %vm1075, %v1068, %v1072
    %v1077 = vand.u32 2147483647, %v1022
    %vm1078 = vcmp.eq.f32.partialorder %v1077, 8.507059e+37
    %v1079 = vand.u32 %v1022, 2147483648
    %v1080 = vor.u32 1.1754944e-38, %v1079
    %v1081 = vsel %vm1078, %v1080, %v1076
    %v1082 = vmul.f32 %v1010, %v1081
    %1083 = vrot.lane.b32.xlu0 %v301, 80
    %v1084 = vpop.permute.xlu0 %1083
    %1085 = vrot.lane.b32.xlu0 %v303, 80
    %v1086 = vpop.permute.xlu0 %1085
    %1087 = vrot.lane.b32.xlu0 %v306, 80
    %v1088 = vpop.permute.xlu0 %1087
    %1089 = vrot.lane.b32.xlu0 %v308, 80
    %v1090 = vpop.permute.xlu0 %1089
    %v1096 = vsel %vm364, %v1037, 0
    %v1099 = vsel %vm364, %v1052, 0
    %v1102 = vsel %vm364, %v1067, 0
    %v1105 = vsel %vm364, %v1082, 0
    %1107 = vmatpush.msra.mxu0 0.0
    %1108 = vmatpush.msra.mxu0 0.0
    %1109 = vmatpush.msra.mxu0 0.0
    %1110 = vmatpush.msra.mxu0 0.0
    %1111 = vmatpush.msra.mxu0 0.0
    %1112 = vmatpush.msra.mxu0 0.0
    %1113 = vmatpush.msra.mxu0 0.0
    %1114 = vmatpush.msra.mxu0 0.0
    %1115 = vmatpush.msra.mxu0 0.0
    %1116 = vmatpush.msra.mxu0 0.0
    %1117 = vmatpush.msra.mxu0 0.0
    %1118 = vmatpush.msra.mxu0 0.0
    %1119 = vmatpush.msra.mxu0 %v1090
    %1120 = vmatpush.msra.mxu0 %v1088
    %1121 = vmatpush.msra.mxu0 %v1086
    %1122 = vmatpush.msra.mxu0 %v1084
    %1123 = vmatmul.f32.gmra.mxu0 %v1096
    %v1124 = vpop.f32.mrf.mxu0
    %v1125 = vadd.f32 0.0, %v1124
    %1126 = vmatmul.f32.gmra.mxu0 %v1099
    %v1127 = vpop.f32.mrf.mxu0
    %v1128 = vadd.f32 0.0, %v1127
    %1129 = vmatmul.f32.gmra.mxu0 %v1102
    %v1130 = vpop.f32.mrf.mxu0
    %v1131 = vadd.f32 0.0, %v1130
    %1132 = vmatmul.f32.gmra.mxu0 %v1105
    %v1133 = vpop.f32.mrf.mxu0
    %v1134 = vadd.f32 0.0, %v1133
    %1135 = vdwg.mxu0
    %1136 = vrot.lane.b32.xlu0 %v263, 64
    %v1137 = vpop.permute.xlu0 %1136
    %1138 = vrot.lane.b32.xlu0 %v265, 64
    %v1139 = vpop.permute.xlu0 %1138
    %1140 = vrot.lane.b32.xlu0 %v268, 64
    %v1141 = vpop.permute.xlu0 %1140
    %1142 = vrot.lane.b32.xlu0 %v270, 64
    %v1143 = vpop.permute.xlu0 %1142
    %1144 = vrot.lane.b32.xlu0 %v282, 64
    %v1145 = vpop.permute.xlu0 %1144
    %1146 = vrot.lane.b32.xlu0 %v284, 64
    %v1147 = vpop.permute.xlu0 %1146
    %1148 = vrot.lane.b32.xlu0 %v287, 64
    %v1149 = vpop.permute.xlu0 %1148
    %1150 = vrot.lane.b32.xlu0 %v289, 64
    %v1151 = vpop.permute.xlu0 %1150
    %v1152 = vsel %vm310, %v1137, 0
    %v1154 = vsel %vm310, %v1139, 0
    %v1156 = vsel %vm310, %v1141, 0
    %v1158 = vsel %vm310, %v1143, 0
    %v1160 = vsel %vm310, %v1145, 0
    %v1162 = vsel %vm310, %v1147, 0
    %v1164 = vsel %vm310, %v1149, 0
    %v1166 = vsel %vm310, %v1151, 0
    %1168 = vmatpush.xpose.msra.mxu0 0.0
    %1169 = vmatpush.xpose.msra.mxu0 0.0
    %1170 = vmatpush.xpose.msra.mxu0 0.0
    %1171 = vmatpush.xpose.msra.mxu0 0.0
    %1172 = vmatpush.xpose.msra.mxu0 0.0
    %1173 = vmatpush.xpose.msra.mxu0 0.0
    %1174 = vmatpush.xpose.msra.mxu0 0.0
    %1175 = vmatpush.xpose.msra.mxu0 0.0
    %1176 = vmatpush.xpose.msra.mxu0 0.0
    %1177 = vmatpush.xpose.msra.mxu0 0.0
    %1178 = vmatpush.xpose.msra.mxu0 0.0
    %1179 = vmatpush.xpose.msra.mxu0 0.0
    %1180 = vmatpush.xpose.msra.mxu0 %v1166
    %1181 = vmatpush.xpose.msra.mxu0 %v1164
    %1182 = vmatpush.xpose.msra.mxu0 %v1162
    %1183 = vmatpush.xpose.msra.mxu0 %v1160
    %1184 = vmatmul.f32.gmra.mxu0 %v1152
    %v1185 = vpop.f32.mrf.mxu0
    %v1186 = vadd.f32 %v79, %v1185
    %1187 = vmatmul.f32.gmra.mxu0 %v1154
    %v1188 = vpop.f32.mrf.mxu0
    %v1189 = vadd.f32 %v80, %v1188
    %1190 = vmatmul.f32.gmra.mxu0 %v1156
    %v1191 = vpop.f32.mrf.mxu0
    %v1192 = vadd.f32 %v81, %v1191
    %1193 = vmatmul.f32.gmra.mxu0 %v1158
    %v1194 = vpop.f32.mrf.mxu0
    %v1195 = vadd.f32 %v82, %v1194
    %1196 = vdwg.mxu0
    %v1197 = vsel %vm364, %v1186, -inf
    %1198 = vmax.xlane.f32.xlu0 %v1197
    %v1199 = vpop.xlane.xlu0 %1198
    %v1200 = vsel %vm364, %v1189, -inf
    %1201 = vmax.xlane.f32.xlu0 %v1200
    %v1202 = vpop.xlane.xlu0 %1201
    %v1203 = vsel %vm364, %v1192, -inf
    %1204 = vmax.xlane.f32.xlu0 %v1203
    %v1205 = vpop.xlane.xlu0 %1204
    %v1206 = vsel %vm364, %v1195, -inf
    %1207 = vmax.xlane.f32.xlu0 %v1206
    %v1208 = vpop.xlane.xlu0 %1207
    %v1209 = vsub.f32 %v1186, %v1199
    %v1210 = vsub.f32 %v1189, %v1202
    %v1211 = vsub.f32 %v1192, %v1205
    %v1212 = vsub.f32 %v1195, %v1208
    %v1213 = vmul.f32 %v1209, 1.442695
    %v1214 = vpow.pop %v1213
    %v1215 = vmul.f32 %v1210, 1.442695
    %v1216 = vpow.pop %v1215
    %v1217 = vmul.f32 %v1211, 1.442695
    %v1218 = vpow.pop %v1217
    %v1219 = vmul.f32 %v1212, 1.442695
    %v1220 = vpow.pop %v1219
    %v1221 = vsel %vm364, %v1214, 0.0
    %1222 = vadd.xlane.f32.xlu0 %v1221
    %v1223 = vpop.xlane.xlu0 %1222
    %v1224 = vsel %vm364, %v1216, 0.0
    %1225 = vadd.xlane.f32.xlu0 %v1224
    %v1226 = vpop.xlane.xlu0 %1225
    %v1227 = vsel %vm364, %v1218, 0.0
    %1228 = vadd.xlane.f32.xlu0 %v1227
    %v1229 = vpop.xlane.xlu0 %1228
    %v1230 = vsel %vm364, %v1220, 0.0
    %1231 = vadd.xlane.f32.xlu0 %v1230
    %v1232 = vpop.xlane.xlu0 %1231
    %v1233 = vrcp.pop %v1223
    %v1234 = vmul.f32 %v1223, %v1233
    %v1235 = vsub.f32 1.0, %v1234
    %v1236 = vmul.f32 %v1233, %v1235
    %v1237 = vadd.f32 %v1233, %v1236
    %vm1238 = vweird.f32 %v1223
    %vm1239 = vweird.f32 %v1233
    %vm1240 = vmor %vm1238, %vm1239
    %v1241 = vsel %vm1240, %v1233, %v1237
    %v1242 = vand.u32 2147483647, %v1223
    %vm1243 = vcmp.eq.f32.partialorder %v1242, 8.507059e+37
    %v1244 = vand.u32 %v1223, 2147483648
    %v1245 = vor.u32 1.1754944e-38, %v1244
    %v1246 = vsel %vm1243, %v1245, %v1241
    %v1247 = vmul.f32 %v1214, %v1246
    %v1248 = vrcp.pop %v1226
    %v1249 = vmul.f32 %v1226, %v1248
    %v1250 = vsub.f32 1.0, %v1249
    %v1251 = vmul.f32 %v1248, %v1250
    %v1252 = vadd.f32 %v1248, %v1251
    %vm1253 = vweird.f32 %v1226
    %vm1254 = vweird.f32 %v1248
    %vm1255 = vmor %vm1253, %vm1254
    %v1256 = vsel %vm1255, %v1248, %v1252
    %v1257 = vand.u32 2147483647, %v1226
    %vm1258 = vcmp.eq.f32.partialorder %v1257, 8.507059e+37
    %v1259 = vand.u32 %v1226, 2147483648
    %v1260 = vor.u32 1.1754944e-38, %v1259
    %v1261 = vsel %vm1258, %v1260, %v1256
    %v1262 = vmul.f32 %v1216, %v1261
    %v1263 = vrcp.pop %v1229
    %v1264 = vmul.f32 %v1229, %v1263
    %v1265 = vsub.f32 1.0, %v1264
    %v1266 = vmul.f32 %v1263, %v1265
    %v1267 = vadd.f32 %v1263, %v1266
    %vm1268 = vweird.f32 %v1229
    %vm1269 = vweird.f32 %v1263
    %vm1270 = vmor %vm1268, %vm1269
    %v1271 = vsel %vm1270, %v1263, %v1267
    %v1272 = vand.u32 2147483647, %v1229
    %vm1273 = vcmp.eq.f32.partialorder %v1272, 8.507059e+37
    %v1274 = vand.u32 %v1229, 2147483648
    %v1275 = vor.u32 1.1754944e-38, %v1274
    %v1276 = vsel %vm1273, %v1275, %v1271
    %v1277 = vmul.f32 %v1218, %v1276
    %v1278 = vrcp.pop %v1232
    %v1279 = vmul.f32 %v1232, %v1278
    %v1280 = vsub.f32 1.0, %v1279
    %v1281 = vmul.f32 %v1278, %v1280
    %v1282 = vadd.f32 %v1278, %v1281
    %vm1283 = vweird.f32 %v1232
    %vm1284 = vweird.f32 %v1278
    %vm1285 = vmor %vm1283, %vm1284
    %v1286 = vsel %vm1285, %v1278, %v1282
    %v1287 = vand.u32 2147483647, %v1232
    %vm1288 = vcmp.eq.f32.partialorder %v1287, 8.507059e+37
    %v1289 = vand.u32 %v1232, 2147483648
    %v1290 = vor.u32 1.1754944e-38, %v1289
    %v1291 = vsel %vm1288, %v1290, %v1286
    %v1292 = vmul.f32 %v1220, %v1291
    %1293 = vrot.lane.b32.xlu0 %v301, 64
    %v1294 = vpop.permute.xlu0 %1293
    %1295 = vrot.lane.b32.xlu0 %v303, 64
    %v1296 = vpop.permute.xlu0 %1295
    %1297 = vrot.lane.b32.xlu0 %v306, 64
    %v1298 = vpop.permute.xlu0 %1297
    %1299 = vrot.lane.b32.xlu0 %v308, 64
    %v1300 = vpop.permute.xlu0 %1299
    %v1306 = vsel %vm364, %v1247, 0
    %v1309 = vsel %vm364, %v1262, 0
    %v1312 = vsel %vm364, %v1277, 0
    %v1315 = vsel %vm364, %v1292, 0
    %1317 = vmatpush.msra.mxu0 0.0
    %1318 = vmatpush.msra.mxu0 0.0
    %1319 = vmatpush.msra.mxu0 0.0
    %1320 = vmatpush.msra.mxu0 0.0
    %1321 = vmatpush.msra.mxu0 0.0
    %1322 = vmatpush.msra.mxu0 0.0
    %1323 = vmatpush.msra.mxu0 0.0
    %1324 = vmatpush.msra.mxu0 0.0
    %1325 = vmatpush.msra.mxu0 0.0
    %1326 = vmatpush.msra.mxu0 0.0
    %1327 = vmatpush.msra.mxu0 0.0
    %1328 = vmatpush.msra.mxu0 0.0
    %1329 = vmatpush.msra.mxu0 %v1300
    %1330 = vmatpush.msra.mxu0 %v1298
    %1331 = vmatpush.msra.mxu0 %v1296
    %1332 = vmatpush.msra.mxu0 %v1294
    %1333 = vmatmul.f32.gmra.mxu0 %v1306
    %v1334 = vpop.f32.mrf.mxu0
    %v1335 = vadd.f32 0.0, %v1334
    %1336 = vmatmul.f32.gmra.mxu0 %v1309
    %v1337 = vpop.f32.mrf.mxu0
    %v1338 = vadd.f32 0.0, %v1337
    %1339 = vmatmul.f32.gmra.mxu0 %v1312
    %v1340 = vpop.f32.mrf.mxu0
    %v1341 = vadd.f32 0.0, %v1340
    %1342 = vmatmul.f32.gmra.mxu0 %v1315
    %v1343 = vpop.f32.mrf.mxu0
    %v1344 = vadd.f32 0.0, %v1343
    %1345 = vdwg.mxu0
    %1346 = vrot.lane.b32.xlu0 %v263, 48
    %v1347 = vpop.permute.xlu0 %1346
    %1348 = vrot.lane.b32.xlu0 %v265, 48
    %v1349 = vpop.permute.xlu0 %1348
    %1350 = vrot.lane.b32.xlu0 %v268, 48
    %v1351 = vpop.permute.xlu0 %1350
    %1352 = vrot.lane.b32.xlu0 %v270, 48
    %v1353 = vpop.permute.xlu0 %1352
    %1354 = vrot.lane.b32.xlu0 %v282, 48
    %v1355 = vpop.permute.xlu0 %1354
    %1356 = vrot.lane.b32.xlu0 %v284, 48
    %v1357 = vpop.permute.xlu0 %1356
    %1358 = vrot.lane.b32.xlu0 %v287, 48
    %v1359 = vpop.permute.xlu0 %1358
    %1360 = vrot.lane.b32.xlu0 %v289, 48
    %v1361 = vpop.permute.xlu0 %1360
    %v1362 = vsel %vm310, %v1347, 0
    %v1364 = vsel %vm310, %v1349, 0
    %v1366 = vsel %vm310, %v1351, 0
    %v1368 = vsel %vm310, %v1353, 0
    %v1370 = vsel %vm310, %v1355, 0
    %v1372 = vsel %vm310, %v1357, 0
    %v1374 = vsel %vm310, %v1359, 0
    %v1376 = vsel %vm310, %v1361, 0
    %1378 = vmatpush.xpose.msra.mxu0 0.0
    %1379 = vmatpush.xpose.msra.mxu0 0.0
    %1380 = vmatpush.xpose.msra.mxu0 0.0
    %1381 = vmatpush.xpose.msra.mxu0 0.0
    %1382 = vmatpush.xpose.msra.mxu0 0.0
    %1383 = vmatpush.xpose.msra.mxu0 0.0
    %1384 = vmatpush.xpose.msra.mxu0 0.0
    %1385 = vmatpush.xpose.msra.mxu0 0.0
    %1386 = vmatpush.xpose.msra.mxu0 0.0
    %1387 = vmatpush.xpose.msra.mxu0 0.0
    %1388 = vmatpush.xpose.msra.mxu0 0.0
    %1389 = vmatpush.xpose.msra.mxu0 0.0
    %1390 = vmatpush.xpose.msra.mxu0 %v1376
    %1391 = vmatpush.xpose.msra.mxu0 %v1374
    %1392 = vmatpush.xpose.msra.mxu0 %v1372
    %1393 = vmatpush.xpose.msra.mxu0 %v1370
    %1394 = vmatmul.f32.gmra.mxu0 %v1362
    %v1395 = vpop.f32.mrf.mxu0
    %v1396 = vadd.f32 %v79, %v1395
    %1397 = vmatmul.f32.gmra.mxu0 %v1364
    %v1398 = vpop.f32.mrf.mxu0
    %v1399 = vadd.f32 %v80, %v1398
    %1400 = vmatmul.f32.gmra.mxu0 %v1366
    %v1401 = vpop.f32.mrf.mxu0
    %v1402 = vadd.f32 %v81, %v1401
    %1403 = vmatmul.f32.gmra.mxu0 %v1368
    %v1404 = vpop.f32.mrf.mxu0
    %v1405 = vadd.f32 %v82, %v1404
    %1406 = vdwg.mxu0
    %v1407 = vsel %vm364, %v1396, -inf
    %1408 = vmax.xlane.f32.xlu0 %v1407
    %v1409 = vpop.xlane.xlu0 %1408
    %v1410 = vsel %vm364, %v1399, -inf
    %1411 = vmax.xlane.f32.xlu0 %v1410
    %v1412 = vpop.xlane.xlu0 %1411
    %v1413 = vsel %vm364, %v1402, -inf
    %1414 = vmax.xlane.f32.xlu0 %v1413
    %v1415 = vpop.xlane.xlu0 %1414
    %v1416 = vsel %vm364, %v1405, -inf
    %1417 = vmax.xlane.f32.xlu0 %v1416
    %v1418 = vpop.xlane.xlu0 %1417
    %v1419 = vsub.f32 %v1396, %v1409
    %v1420 = vsub.f32 %v1399, %v1412
    %v1421 = vsub.f32 %v1402, %v1415
    %v1422 = vsub.f32 %v1405, %v1418
    %v1423 = vmul.f32 %v1419, 1.442695
    %v1424 = vpow.pop %v1423
    %v1425 = vmul.f32 %v1420, 1.442695
    %v1426 = vpow.pop %v1425
    %v1427 = vmul.f32 %v1421, 1.442695
    %v1428 = vpow.pop %v1427
    %v1429 = vmul.f32 %v1422, 1.442695
    %v1430 = vpow.pop %v1429
    %v1431 = vsel %vm364, %v1424, 0.0
    %1432 = vadd.xlane.f32.xlu0 %v1431
    %v1433 = vpop.xlane.xlu0 %1432
    %v1434 = vsel %vm364, %v1426, 0.0
    %1435 = vadd.xlane.f32.xlu0 %v1434
    %v1436 = vpop.xlane.xlu0 %1435
    %v1437 = vsel %vm364, %v1428, 0.0
    %1438 = vadd.xlane.f32.xlu0 %v1437
    %v1439 = vpop.xlane.xlu0 %1438
    %v1440 = vsel %vm364, %v1430, 0.0
    %1441 = vadd.xlane.f32.xlu0 %v1440
    %v1442 = vpop.xlane.xlu0 %1441
    %v1443 = vrcp.pop %v1433
    %v1444 = vmul.f32 %v1433, %v1443
    %v1445 = vsub.f32 1.0, %v1444
    %v1446 = vmul.f32 %v1443, %v1445
    %v1447 = vadd.f32 %v1443, %v1446
    %vm1448 = vweird.f32 %v1433
    %vm1449 = vweird.f32 %v1443
    %vm1450 = vmor %vm1448, %vm1449
    %v1451 = vsel %vm1450, %v1443, %v1447
    %v1452 = vand.u32 2147483647, %v1433
    %vm1453 = vcmp.eq.f32.partialorder %v1452, 8.507059e+37
    %v1454 = vand.u32 %v1433, 2147483648
    %v1455 = vor.u32 1.1754944e-38, %v1454
    %v1456 = vsel %vm1453, %v1455, %v1451
    %v1457 = vmul.f32 %v1424, %v1456
    %v1458 = vrcp.pop %v1436
    %v1459 = vmul.f32 %v1436, %v1458
    %v1460 = vsub.f32 1.0, %v1459
    %v1461 = vmul.f32 %v1458, %v1460
    %v1462 = vadd.f32 %v1458, %v1461
    %vm1463 = vweird.f32 %v1436
    %vm1464 = vweird.f32 %v1458
    %vm1465 = vmor %vm1463, %vm1464
    %v1466 = vsel %vm1465, %v1458, %v1462
    %v1467 = vand.u32 2147483647, %v1436
    %vm1468 = vcmp.eq.f32.partialorder %v1467, 8.507059e+37
    %v1469 = vand.u32 %v1436, 2147483648
    %v1470 = vor.u32 1.1754944e-38, %v1469
    %v1471 = vsel %vm1468, %v1470, %v1466
    %v1472 = vmul.f32 %v1426, %v1471
    %v1473 = vrcp.pop %v1439
    %v1474 = vmul.f32 %v1439, %v1473
    %v1475 = vsub.f32 1.0, %v1474
    %v1476 = vmul.f32 %v1473, %v1475
    %v1477 = vadd.f32 %v1473, %v1476
    %vm1478 = vweird.f32 %v1439
    %vm1479 = vweird.f32 %v1473
    %vm1480 = vmor %vm1478, %vm1479
    %v1481 = vsel %vm1480, %v1473, %v1477
    %v1482 = vand.u32 2147483647, %v1439
    %vm1483 = vcmp.eq.f32.partialorder %v1482, 8.507059e+37
    %v1484 = vand.u32 %v1439, 2147483648
    %v1485 = vor.u32 1.1754944e-38, %v1484
    %v1486 = vsel %vm1483, %v1485, %v1481
    %v1487 = vmul.f32 %v1428, %v1486
    %v1488 = vrcp.pop %v1442
    %v1489 = vmul.f32 %v1442, %v1488
    %v1490 = vsub.f32 1.0, %v1489
    %v1491 = vmul.f32 %v1488, %v1490
    %v1492 = vadd.f32 %v1488, %v1491
    %vm1493 = vweird.f32 %v1442
    %vm1494 = vweird.f32 %v1488
    %vm1495 = vmor %vm1493, %vm1494
    %v1496 = vsel %vm1495, %v1488, %v1492
    %v1497 = vand.u32 2147483647, %v1442
    %vm1498 = vcmp.eq.f32.partialorder %v1497, 8.507059e+37
    %v1499 = vand.u32 %v1442, 2147483648
    %v1500 = vor.u32 1.1754944e-38, %v1499
    %v1501 = vsel %vm1498, %v1500, %v1496
    %v1502 = vmul.f32 %v1430, %v1501
    %1503 = vrot.lane.b32.xlu0 %v301, 48
    %v1504 = vpop.permute.xlu0 %1503
    %1505 = vrot.lane.b32.xlu0 %v303, 48
    %v1506 = vpop.permute.xlu0 %1505
    %1507 = vrot.lane.b32.xlu0 %v306, 48
    %v1508 = vpop.permute.xlu0 %1507
    %1509 = vrot.lane.b32.xlu0 %v308, 48
    %v1510 = vpop.permute.xlu0 %1509
    %v1516 = vsel %vm364, %v1457, 0
    %v1519 = vsel %vm364, %v1472, 0
    %v1522 = vsel %vm364, %v1487, 0
    %v1525 = vsel %vm364, %v1502, 0
    %1527 = vmatpush.msra.mxu0 0.0
    %1528 = vmatpush.msra.mxu0 0.0
    %1529 = vmatpush.msra.mxu0 0.0
    %1530 = vmatpush.msra.mxu0 0.0
    %1531 = vmatpush.msra.mxu0 0.0
    %1532 = vmatpush.msra.mxu0 0.0
    %1533 = vmatpush.msra.mxu0 0.0
    %1534 = vmatpush.msra.mxu0 0.0
    %1535 = vmatpush.msra.mxu0 0.0
    %1536 = vmatpush.msra.mxu0 0.0
    %1537 = vmatpush.msra.mxu0 0.0
    %1538 = vmatpush.msra.mxu0 0.0
    %1539 = vmatpush.msra.mxu0 %v1510
    %1540 = vmatpush.msra.mxu0 %v1508
    %1541 = vmatpush.msra.mxu0 %v1506
    %1542 = vmatpush.msra.mxu0 %v1504
    %1543 = vmatmul.f32.gmra.mxu0 %v1516
    %v1544 = vpop.f32.mrf.mxu0
    %v1545 = vadd.f32 0.0, %v1544
    %1546 = vmatmul.f32.gmra.mxu0 %v1519
    %v1547 = vpop.f32.mrf.mxu0
    %v1548 = vadd.f32 0.0, %v1547
    %1549 = vmatmul.f32.gmra.mxu0 %v1522
    %v1550 = vpop.f32.mrf.mxu0
    %v1551 = vadd.f32 0.0, %v1550
    %1552 = vmatmul.f32.gmra.mxu0 %v1525
    %v1553 = vpop.f32.mrf.mxu0
    %v1554 = vadd.f32 0.0, %v1553
    %1555 = vdwg.mxu0
    %1556 = vrot.lane.b32.xlu0 %v263, 32
    %v1557 = vpop.permute.xlu0 %1556
    %1558 = vrot.lane.b32.xlu0 %v265, 32
    %v1559 = vpop.permute.xlu0 %1558
    %1560 = vrot.lane.b32.xlu0 %v268, 32
    %v1561 = vpop.permute.xlu0 %1560
    %1562 = vrot.lane.b32.xlu0 %v270, 32
    %v1563 = vpop.permute.xlu0 %1562
    %1564 = vrot.lane.b32.xlu0 %v282, 32
    %v1565 = vpop.permute.xlu0 %1564
    %1566 = vrot.lane.b32.xlu0 %v284, 32
    %v1567 = vpop.permute.xlu0 %1566
    %1568 = vrot.lane.b32.xlu0 %v287, 32
    %v1569 = vpop.permute.xlu0 %1568
    %1570 = vrot.lane.b32.xlu0 %v289, 32
    %v1571 = vpop.permute.xlu0 %1570
    %v1572 = vsel %vm310, %v1557, 0
    %v1574 = vsel %vm310, %v1559, 0
    %v1576 = vsel %vm310, %v1561, 0
    %v1578 = vsel %vm310, %v1563, 0
    %v1580 = vsel %vm310, %v1565, 0
    %v1582 = vsel %vm310, %v1567, 0
    %v1584 = vsel %vm310, %v1569, 0
    %v1586 = vsel %vm310, %v1571, 0
    %1588 = vmatpush.xpose.msra.mxu0 0.0
    %1589 = vmatpush.xpose.msra.mxu0 0.0
    %1590 = vmatpush.xpose.msra.mxu0 0.0
    %1591 = vmatpush.xpose.msra.mxu0 0.0
    %1592 = vmatpush.xpose.msra.mxu0 0.0
    %1593 = vmatpush.xpose.msra.mxu0 0.0
    %1594 = vmatpush.xpose.msra.mxu0 0.0
    %1595 = vmatpush.xpose.msra.mxu0 0.0
    %1596 = vmatpush.xpose.msra.mxu0 0.0
    %1597 = vmatpush.xpose.msra.mxu0 0.0
    %1598 = vmatpush.xpose.msra.mxu0 0.0
    %1599 = vmatpush.xpose.msra.mxu0 0.0
    %1600 = vmatpush.xpose.msra.mxu0 %v1586
    %1601 = vmatpush.xpose.msra.mxu0 %v1584
    %1602 = vmatpush.xpose.msra.mxu0 %v1582
    %1603 = vmatpush.xpose.msra.mxu0 %v1580
    %1604 = vmatmul.f32.gmra.mxu0 %v1572
    %v1605 = vpop.f32.mrf.mxu0
    %v1606 = vadd.f32 %v79, %v1605
    %1607 = vmatmul.f32.gmra.mxu0 %v1574
    %v1608 = vpop.f32.mrf.mxu0
    %v1609 = vadd.f32 %v80, %v1608
    %1610 = vmatmul.f32.gmra.mxu0 %v1576
    %v1611 = vpop.f32.mrf.mxu0
    %v1612 = vadd.f32 %v81, %v1611
    %1613 = vmatmul.f32.gmra.mxu0 %v1578
    %v1614 = vpop.f32.mrf.mxu0
    %v1615 = vadd.f32 %v82, %v1614
    %1616 = vdwg.mxu0
    %v1617 = vsel %vm364, %v1606, -inf
    %1618 = vmax.xlane.f32.xlu0 %v1617
    %v1619 = vpop.xlane.xlu0 %1618
    %v1620 = vsel %vm364, %v1609, -inf
    %1621 = vmax.xlane.f32.xlu0 %v1620
    %v1622 = vpop.xlane.xlu0 %1621
    %v1623 = vsel %vm364, %v1612, -inf
    %1624 = vmax.xlane.f32.xlu0 %v1623
    %v1625 = vpop.xlane.xlu0 %1624
    %v1626 = vsel %vm364, %v1615, -inf
    %1627 = vmax.xlane.f32.xlu0 %v1626
    %v1628 = vpop.xlane.xlu0 %1627
    %v1629 = vsub.f32 %v1606, %v1619
    %v1630 = vsub.f32 %v1609, %v1622
    %v1631 = vsub.f32 %v1612, %v1625
    %v1632 = vsub.f32 %v1615, %v1628
    %v1633 = vmul.f32 %v1629, 1.442695
    %v1634 = vpow.pop %v1633
    %v1635 = vmul.f32 %v1630, 1.442695
    %v1636 = vpow.pop %v1635
    %v1637 = vmul.f32 %v1631, 1.442695
    %v1638 = vpow.pop %v1637
    %v1639 = vmul.f32 %v1632, 1.442695
    %v1640 = vpow.pop %v1639
    %v1641 = vsel %vm364, %v1634, 0.0
    %1642 = vadd.xlane.f32.xlu0 %v1641
    %v1643 = vpop.xlane.xlu0 %1642
    %v1644 = vsel %vm364, %v1636, 0.0
    %1645 = vadd.xlane.f32.xlu0 %v1644
    %v1646 = vpop.xlane.xlu0 %1645
    %v1647 = vsel %vm364, %v1638, 0.0
    %1648 = vadd.xlane.f32.xlu0 %v1647
    %v1649 = vpop.xlane.xlu0 %1648
    %v1650 = vsel %vm364, %v1640, 0.0
    %1651 = vadd.xlane.f32.xlu0 %v1650
    %v1652 = vpop.xlane.xlu0 %1651
    %v1653 = vrcp.pop %v1643
    %v1654 = vmul.f32 %v1643, %v1653
    %v1655 = vsub.f32 1.0, %v1654
    %v1656 = vmul.f32 %v1653, %v1655
    %v1657 = vadd.f32 %v1653, %v1656
    %vm1658 = vweird.f32 %v1643
    %vm1659 = vweird.f32 %v1653
    %vm1660 = vmor %vm1658, %vm1659
    %v1661 = vsel %vm1660, %v1653, %v1657
    %v1662 = vand.u32 2147483647, %v1643
    %vm1663 = vcmp.eq.f32.partialorder %v1662, 8.507059e+37
    %v1664 = vand.u32 %v1643, 2147483648
    %v1665 = vor.u32 1.1754944e-38, %v1664
    %v1666 = vsel %vm1663, %v1665, %v1661
    %v1667 = vmul.f32 %v1634, %v1666
    %v1668 = vrcp.pop %v1646
    %v1669 = vmul.f32 %v1646, %v1668
    %v1670 = vsub.f32 1.0, %v1669
    %v1671 = vmul.f32 %v1668, %v1670
    %v1672 = vadd.f32 %v1668, %v1671
    %vm1673 = vweird.f32 %v1646
    %vm1674 = vweird.f32 %v1668
    %vm1675 = vmor %vm1673, %vm1674
    %v1676 = vsel %vm1675, %v1668, %v1672
    %v1677 = vand.u32 2147483647, %v1646
    %vm1678 = vcmp.eq.f32.partialorder %v1677, 8.507059e+37
    %v1679 = vand.u32 %v1646, 2147483648
    %v1680 = vor.u32 1.1754944e-38, %v1679
    %v1681 = vsel %vm1678, %v1680, %v1676
    %v1682 = vmul.f32 %v1636, %v1681
    %v1683 = vrcp.pop %v1649
    %v1684 = vmul.f32 %v1649, %v1683
    %v1685 = vsub.f32 1.0, %v1684
    %v1686 = vmul.f32 %v1683, %v1685
    %v1687 = vadd.f32 %v1683, %v1686
    %vm1688 = vweird.f32 %v1649
    %vm1689 = vweird.f32 %v1683
    %vm1690 = vmor %vm1688, %vm1689
    %v1691 = vsel %vm1690, %v1683, %v1687
    %v1692 = vand.u32 2147483647, %v1649
    %vm1693 = vcmp.eq.f32.partialorder %v1692, 8.507059e+37
    %v1694 = vand.u32 %v1649, 2147483648
    %v1695 = vor.u32 1.1754944e-38, %v1694
    %v1696 = vsel %vm1693, %v1695, %v1691
    %v1697 = vmul.f32 %v1638, %v1696
    %v1698 = vrcp.pop %v1652
    %v1699 = vmul.f32 %v1652, %v1698
    %v1700 = vsub.f32 1.0, %v1699
    %v1701 = vmul.f32 %v1698, %v1700
    %v1702 = vadd.f32 %v1698, %v1701
    %vm1703 = vweird.f32 %v1652
    %vm1704 = vweird.f32 %v1698
    %vm1705 = vmor %vm1703, %vm1704
    %v1706 = vsel %vm1705, %v1698, %v1702
    %v1707 = vand.u32 2147483647, %v1652
    %vm1708 = vcmp.eq.f32.partialorder %v1707, 8.507059e+37
    %v1709 = vand.u32 %v1652, 2147483648
    %v1710 = vor.u32 1.1754944e-38, %v1709
    %v1711 = vsel %vm1708, %v1710, %v1706
    %v1712 = vmul.f32 %v1640, %v1711
    %1713 = vrot.lane.b32.xlu0 %v301, 32
    %v1714 = vpop.permute.xlu0 %1713
    %1715 = vrot.lane.b32.xlu0 %v303, 32
    %v1716 = vpop.permute.xlu0 %1715
    %1717 = vrot.lane.b32.xlu0 %v306, 32
    %v1718 = vpop.permute.xlu0 %1717
    %1719 = vrot.lane.b32.xlu0 %v308, 32
    %v1720 = vpop.permute.xlu0 %1719
    %v1726 = vsel %vm364, %v1667, 0
    %v1729 = vsel %vm364, %v1682, 0
    %v1732 = vsel %vm364, %v1697, 0
    %v1735 = vsel %vm364, %v1712, 0
    %1737 = vmatpush.msra.mxu0 0.0
    %1738 = vmatpush.msra.mxu0 0.0
    %1739 = vmatpush.msra.mxu0 0.0
    %1740 = vmatpush.msra.mxu0 0.0
    %1741 = vmatpush.msra.mxu0 0.0
    %1742 = vmatpush.msra.mxu0 0.0
    %1743 = vmatpush.msra.mxu0 0.0
    %1744 = vmatpush.msra.mxu0 0.0
    %1745 = vmatpush.msra.mxu0 0.0
    %1746 = vmatpush.msra.mxu0 0.0
    %1747 = vmatpush.msra.mxu0 0.0
    %1748 = vmatpush.msra.mxu0 0.0
    %1749 = vmatpush.msra.mxu0 %v1720
    %1750 = vmatpush.msra.mxu0 %v1718
    %1751 = vmatpush.msra.mxu0 %v1716
    %1752 = vmatpush.msra.mxu0 %v1714
    %1753 = vmatmul.f32.gmra.mxu0 %v1726
    %v1754 = vpop.f32.mrf.mxu0
    %v1755 = vadd.f32 0.0, %v1754
    %1756 = vmatmul.f32.gmra.mxu0 %v1729
    %v1757 = vpop.f32.mrf.mxu0
    %v1758 = vadd.f32 0.0, %v1757
    %1759 = vmatmul.f32.gmra.mxu0 %v1732
    %v1760 = vpop.f32.mrf.mxu0
    %v1761 = vadd.f32 0.0, %v1760
    %1762 = vmatmul.f32.gmra.mxu0 %v1735
    %v1763 = vpop.f32.mrf.mxu0
    %v1764 = vadd.f32 0.0, %v1763
    %1765 = vdwg.mxu0
    %1766 = vrot.lane.b32.xlu0 %v263, 16
    %v1767 = vpop.permute.xlu0 %1766
    %1768 = vrot.lane.b32.xlu0 %v265, 16
    %v1769 = vpop.permute.xlu0 %1768
    %1770 = vrot.lane.b32.xlu0 %v268, 16
    %v1771 = vpop.permute.xlu0 %1770
    %1772 = vrot.lane.b32.xlu0 %v270, 16
    %v1773 = vpop.permute.xlu0 %1772
    %1774 = vrot.lane.b32.xlu0 %v282, 16
    %v1775 = vpop.permute.xlu0 %1774
    %1776 = vrot.lane.b32.xlu0 %v284, 16
    %v1777 = vpop.permute.xlu0 %1776
    %1778 = vrot.lane.b32.xlu0 %v287, 16
    %v1779 = vpop.permute.xlu0 %1778
    %1780 = vrot.lane.b32.xlu0 %v289, 16
    %v1781 = vpop.permute.xlu0 %1780
    %v1782 = vsel %vm310, %v1767, 0
    %v1784 = vsel %vm310, %v1769, 0
    %v1786 = vsel %vm310, %v1771, 0
    %v1788 = vsel %vm310, %v1773, 0
    %v1790 = vsel %vm310, %v1775, 0
    %v1792 = vsel %vm310, %v1777, 0
    %v1794 = vsel %vm310, %v1779, 0
    %v1796 = vsel %vm310, %v1781, 0
    %1798 = vmatpush.xpose.msra.mxu0 0.0
    %1799 = vmatpush.xpose.msra.mxu0 0.0
    %1800 = vmatpush.xpose.msra.mxu0 0.0
    %1801 = vmatpush.xpose.msra.mxu0 0.0
    %1802 = vmatpush.xpose.msra.mxu0 0.0
    %1803 = vmatpush.xpose.msra.mxu0 0.0
    %1804 = vmatpush.xpose.msra.mxu0 0.0
    %1805 = vmatpush.xpose.msra.mxu0 0.0
    %1806 = vmatpush.xpose.msra.mxu0 0.0
    %1807 = vmatpush.xpose.msra.mxu0 0.0
    %1808 = vmatpush.xpose.msra.mxu0 0.0
    %1809 = vmatpush.xpose.msra.mxu0 0.0
    %1810 = vmatpush.xpose.msra.mxu0 %v1796
    %1811 = vmatpush.xpose.msra.mxu0 %v1794
    %1812 = vmatpush.xpose.msra.mxu0 %v1792
    %1813 = vmatpush.xpose.msra.mxu0 %v1790
    %1814 = vmatmul.f32.gmra.mxu0 %v1782
    %v1815 = vpop.f32.mrf.mxu0
    %v1816 = vadd.f32 %v79, %v1815
    %1817 = vmatmul.f32.gmra.mxu0 %v1784
    %v1818 = vpop.f32.mrf.mxu0
    %v1819 = vadd.f32 %v80, %v1818
    %1820 = vmatmul.f32.gmra.mxu0 %v1786
    %v1821 = vpop.f32.mrf.mxu0
    %v1822 = vadd.f32 %v81, %v1821
    %1823 = vmatmul.f32.gmra.mxu0 %v1788
    %v1824 = vpop.f32.mrf.mxu0
    %v1825 = vadd.f32 %v82, %v1824
    %1826 = vdwg.mxu0
    %v1827 = vsel %vm364, %v1816, -inf
    %1828 = vmax.xlane.f32.xlu0 %v1827
    %v1829 = vpop.xlane.xlu0 %1828
    %v1830 = vsel %vm364, %v1819, -inf
    %1831 = vmax.xlane.f32.xlu0 %v1830
    %v1832 = vpop.xlane.xlu0 %1831
    %v1833 = vsel %vm364, %v1822, -inf
    %1834 = vmax.xlane.f32.xlu0 %v1833
    %v1835 = vpop.xlane.xlu0 %1834
    %v1836 = vsel %vm364, %v1825, -inf
    %1837 = vmax.xlane.f32.xlu0 %v1836
    %v1838 = vpop.xlane.xlu0 %1837
    %v1839 = vsub.f32 %v1816, %v1829
    %v1840 = vsub.f32 %v1819, %v1832
    %v1841 = vsub.f32 %v1822, %v1835
    %v1842 = vsub.f32 %v1825, %v1838
    %v1843 = vmul.f32 %v1839, 1.442695
    %v1844 = vpow.pop %v1843
    %v1845 = vmul.f32 %v1840, 1.442695
    %v1846 = vpow.pop %v1845
    %v1847 = vmul.f32 %v1841, 1.442695
    %v1848 = vpow.pop %v1847
    %v1849 = vmul.f32 %v1842, 1.442695
    %v1850 = vpow.pop %v1849
    %v1851 = vsel %vm364, %v1844, 0.0
    %1852 = vadd.xlane.f32.xlu0 %v1851
    %v1853 = vpop.xlane.xlu0 %1852
    %v1854 = vsel %vm364, %v1846, 0.0
    %1855 = vadd.xlane.f32.xlu0 %v1854
    %v1856 = vpop.xlane.xlu0 %1855
    %v1857 = vsel %vm364, %v1848, 0.0
    %1858 = vadd.xlane.f32.xlu0 %v1857
    %v1859 = vpop.xlane.xlu0 %1858
    %v1860 = vsel %vm364, %v1850, 0.0
    %1861 = vadd.xlane.f32.xlu0 %v1860
    %v1862 = vpop.xlane.xlu0 %1861
    %v1863 = vrcp.pop %v1853
    %v1864 = vmul.f32 %v1853, %v1863
    %v1865 = vsub.f32 1.0, %v1864
    %v1866 = vmul.f32 %v1863, %v1865
    %v1867 = vadd.f32 %v1863, %v1866
    %vm1868 = vweird.f32 %v1853
    %vm1869 = vweird.f32 %v1863
    %vm1870 = vmor %vm1868, %vm1869
    %v1871 = vsel %vm1870, %v1863, %v1867
    %v1872 = vand.u32 2147483647, %v1853
    %vm1873 = vcmp.eq.f32.partialorder %v1872, 8.507059e+37
    %v1874 = vand.u32 %v1853, 2147483648
    %v1875 = vor.u32 1.1754944e-38, %v1874
    %v1876 = vsel %vm1873, %v1875, %v1871
    %v1877 = vmul.f32 %v1844, %v1876
    %v1878 = vrcp.pop %v1856
    %v1879 = vmul.f32 %v1856, %v1878
    %v1880 = vsub.f32 1.0, %v1879
    %v1881 = vmul.f32 %v1878, %v1880
    %v1882 = vadd.f32 %v1878, %v1881
    %vm1883 = vweird.f32 %v1856
    %vm1884 = vweird.f32 %v1878
    %vm1885 = vmor %vm1883, %vm1884
    %v1886 = vsel %vm1885, %v1878, %v1882
    %v1887 = vand.u32 2147483647, %v1856
    %vm1888 = vcmp.eq.f32.partialorder %v1887, 8.507059e+37
    %v1889 = vand.u32 %v1856, 2147483648
    %v1890 = vor.u32 1.1754944e-38, %v1889
    %v1891 = vsel %vm1888, %v1890, %v1886
    %v1892 = vmul.f32 %v1846, %v1891
    %v1893 = vrcp.pop %v1859
    %v1894 = vmul.f32 %v1859, %v1893
    %v1895 = vsub.f32 1.0, %v1894
    %v1896 = vmul.f32 %v1893, %v1895
    %v1897 = vadd.f32 %v1893, %v1896
    %vm1898 = vweird.f32 %v1859
    %vm1899 = vweird.f32 %v1893
    %vm1900 = vmor %vm1898, %vm1899
    %v1901 = vsel %vm1900, %v1893, %v1897
    %v1902 = vand.u32 2147483647, %v1859
    %vm1903 = vcmp.eq.f32.partialorder %v1902, 8.507059e+37
    %v1904 = vand.u32 %v1859, 2147483648
    %v1905 = vor.u32 1.1754944e-38, %v1904
    %v1906 = vsel %vm1903, %v1905, %v1901
    %v1907 = vmul.f32 %v1848, %v1906
    %v1908 = vrcp.pop %v1862
    %v1909 = vmul.f32 %v1862, %v1908
    %v1910 = vsub.f32 1.0, %v1909
    %v1911 = vmul.f32 %v1908, %v1910
    %v1912 = vadd.f32 %v1908, %v1911
    %vm1913 = vweird.f32 %v1862
    %vm1914 = vweird.f32 %v1908
    %vm1915 = vmor %vm1913, %vm1914
    %v1916 = vsel %vm1915, %v1908, %v1912
    %v1917 = vand.u32 2147483647, %v1862
    %vm1918 = vcmp.eq.f32.partialorder %v1917, 8.507059e+37
    %v1919 = vand.u32 %v1862, 2147483648
    %v1920 = vor.u32 1.1754944e-38, %v1919
    %v1921 = vsel %vm1918, %v1920, %v1916
    %v1922 = vmul.f32 %v1850, %v1921
    %1923 = vrot.lane.b32.xlu0 %v301, 16
    %v1924 = vpop.permute.xlu0 %1923
    %1925 = vrot.lane.b32.xlu0 %v303, 16
    %v1926 = vpop.permute.xlu0 %1925
    %1927 = vrot.lane.b32.xlu0 %v306, 16
    %v1928 = vpop.permute.xlu0 %1927
    %1929 = vrot.lane.b32.xlu0 %v308, 16
    %v1930 = vpop.permute.xlu0 %1929
    %v1936 = vsel %vm364, %v1877, 0
    %v1939 = vsel %vm364, %v1892, 0
    %v1942 = vsel %vm364, %v1907, 0
    %v1945 = vsel %vm364, %v1922, 0
    %1947 = vmatpush.msra.mxu0 0.0
    %1948 = vmatpush.msra.mxu0 0.0
    %1949 = vmatpush.msra.mxu0 0.0
    %1950 = vmatpush.msra.mxu0 0.0
    %1951 = vmatpush.msra.mxu0 0.0
    %1952 = vmatpush.msra.mxu0 0.0
    %1953 = vmatpush.msra.mxu0 0.0
    %1954 = vmatpush.msra.mxu0 0.0
    %1955 = vmatpush.msra.mxu0 0.0
    %1956 = vmatpush.msra.mxu0 0.0
    %1957 = vmatpush.msra.mxu0 0.0
    %1958 = vmatpush.msra.mxu0 0.0
    %1959 = vmatpush.msra.mxu0 %v1930
    %1960 = vmatpush.msra.mxu0 %v1928
    %1961 = vmatpush.msra.mxu0 %v1926
    %1962 = vmatpush.msra.mxu0 %v1924
    %1963 = vmatmul.f32.gmra.mxu0 %v1936
    %v1964 = vpop.f32.mrf.mxu0
    %v1965 = vadd.f32 0.0, %v1964
    %1966 = vmatmul.f32.gmra.mxu0 %v1939
    %v1967 = vpop.f32.mrf.mxu0
    %v1968 = vadd.f32 0.0, %v1967
    %1969 = vmatmul.f32.gmra.mxu0 %v1942
    %v1970 = vpop.f32.mrf.mxu0
    %v1971 = vadd.f32 0.0, %v1970
    %1972 = vmatmul.f32.gmra.mxu0 %v1945
    %v1973 = vpop.f32.mrf.mxu0
    %v1974 = vadd.f32 0.0, %v1973
    %1975 = vdwg.mxu0
    %1980 = vrot.lane.b32.xlu0 %v705, 16
    %v1981 = vpop.permute.xlu0 %1980
    %1982 = vrot.lane.b32.xlu0 %v708, 16
    %v1983 = vpop.permute.xlu0 %1982
    %1984 = vrot.lane.b32.xlu0 %v711, 16
    %v1985 = vpop.permute.xlu0 %1984
    %1986 = vrot.lane.b32.xlu0 %v714, 16
    %v1987 = vpop.permute.xlu0 %1986
    %1996 = vrot.lane.b32.xlu0 %v915, 32
    %v1997 = vpop.permute.xlu0 %1996
    %1998 = vrot.lane.b32.xlu0 %v918, 32
    %v1999 = vpop.permute.xlu0 %1998
    %2000 = vrot.lane.b32.xlu0 %v921, 32
    %v2001 = vpop.permute.xlu0 %2000
    %2002 = vrot.lane.b32.xlu0 %v924, 32
    %v2003 = vpop.permute.xlu0 %2002
    %2012 = vrot.lane.b32.xlu0 %v1125, 48
    %v2013 = vpop.permute.xlu0 %2012
    %2014 = vrot.lane.b32.xlu0 %v1128, 48
    %v2015 = vpop.permute.xlu0 %2014
    %2016 = vrot.lane.b32.xlu0 %v1131, 48
    %v2017 = vpop.permute.xlu0 %2016
    %2018 = vrot.lane.b32.xlu0 %v1134, 48
    %v2019 = vpop.permute.xlu0 %2018
    %2028 = vrot.lane.b32.xlu0 %v1335, 64
    %v2029 = vpop.permute.xlu0 %2028
    %2030 = vrot.lane.b32.xlu0 %v1338, 64
    %v2031 = vpop.permute.xlu0 %2030
    %2032 = vrot.lane.b32.xlu0 %v1341, 64
    %v2033 = vpop.permute.xlu0 %2032
    %2034 = vrot.lane.b32.xlu0 %v1344, 64
    %v2035 = vpop.permute.xlu0 %2034
    %2044 = vrot.lane.b32.xlu0 %v1545, 80
    %v2045 = vpop.permute.xlu0 %2044
    %2046 = vrot.lane.b32.xlu0 %v1548, 80
    %v2047 = vpop.permute.xlu0 %2046
    %2048 = vrot.lane.b32.xlu0 %v1551, 80
    %v2049 = vpop.permute.xlu0 %2048
    %2050 = vrot.lane.b32.xlu0 %v1554, 80
    %v2051 = vpop.permute.xlu0 %2050
    %2060 = vrot.lane.b32.xlu0 %v1755, 96
    %v2061 = vpop.permute.xlu0 %2060
    %2062 = vrot.lane.b32.xlu0 %v1758, 96
    %v2063 = vpop.permute.xlu0 %2062
    %2064 = vrot.lane.b32.xlu0 %v1761, 96
    %v2065 = vpop.permute.xlu0 %2064
    %2066 = vrot.lane.b32.xlu0 %v1764, 96
    %v2067 = vpop.permute.xlu0 %2066
    %2076 = vrot.lane.b32.xlu0 %v1965, 112
    %v2077 = vpop.permute.xlu0 %2076
    %2078 = vrot.lane.b32.xlu0 %v1968, 112
    %v2079 = vpop.permute.xlu0 %2078
    %2080 = vrot.lane.b32.xlu0 %v1971, 112
    %v2081 = vpop.permute.xlu0 %2080
    %2082 = vrot.lane.b32.xlu0 %v1974, 112
    %v2083 = vpop.permute.xlu0 %2082
    %v2088 = vsel %vm310, %v491, %v1981
    %v2089 = vsel %vm310, %v494, %v1983
    %v2090 = vsel %vm310, %v497, %v1985
    %v2091 = vsel %vm310, %v500, %v1987
    %v2092 = vsel %vm364, %v2088, %v1997
    %v2093 = vsel %vm364, %v2089, %v1999
    %v2094 = vsel %vm364, %v2090, %v2001
    %v2095 = vsel %vm364, %v2091, %v2003
    %vm2096 = vcmask 392192
    %v2097 = vsel %vm2096, %v2092, %v2013
    %v2098 = vsel %vm2096, %v2093, %v2015
    %v2099 = vsel %vm2096, %v2094, %v2017
    %v2100 = vsel %vm2096, %v2095, %v2019
    %vm2101 = vcmask 523264
    %v2102 = vsel %vm2101, %v2097, %v2029
    %v2103 = vsel %vm2101, %v2098, %v2031
    %v2104 = vsel %vm2101, %v2099, %v2033
    %v2105 = vsel %vm2101, %v2100, %v2035
    %vm2106 = vcmask 654336
    %v2107 = vsel %vm2106, %v2102, %v2045
    %v2108 = vsel %vm2106, %v2103, %v2047
    %v2109 = vsel %vm2106, %v2104, %v2049
    %v2110 = vsel %vm2106, %v2105, %v2051
    %vm2111 = vcmask 785408
    %v2112 = vsel %vm2111, %v2107, %v2061
    %v2113 = vsel %vm2111, %v2108, %v2063
    %v2114 = vsel %vm2111, %v2109, %v2065
    %v2115 = vsel %vm2111, %v2110, %v2067
    %vm2116 = vcmask 916480
    %v2117 = vsel %vm2116, %v2112, %v2077
    %v2118 = vsel %vm2116, %v2113, %v2079
    %v2119 = vsel %vm2116, %v2114, %v2081
    %v2120 = vsel %vm2116, %v2115, %v2083
    %v2121 = vpack.c.bf16 %v2118, %v2117
    %v2122 = vpack.c.bf16 %v2120, %v2119
    %v2123 = vld [vmem:[#allocation5] sm:$0xf]
    %v2124 = vld [vmem:[#allocation5 + $0x4] sm:$0xf]
    %v2125 = vld [vmem:[#allocation5 + $0x8] sm:$0xf]
    %v2126 = vld [vmem:[#allocation5 + $0xc] sm:$0xf]
    %v2127 = vld [vmem:[#allocation5 + $0x10] sm:$0xf]
    %v2128 = vld [vmem:[#allocation5 + $0x14] sm:$0xf]
    %v2129 = vld [vmem:[#allocation5 + $0x18] sm:$0xf]
    %v2130 = vld [vmem:[#allocation5 + $0x1c] sm:$0xf]
    %v2131 = vld [vmem:[#allocation5 + $0x20] sm:$0xf]
    %v2132 = vld [vmem:[#allocation5 + $0x24] sm:$0xf]
    %v2133 = vld [vmem:[#allocation5 + $0x28] sm:$0xf]
    %v2134 = vld [vmem:[#allocation5 + $0x2c] sm:$0xf]
    %v2135 = vld [vmem:[#allocation5 + $0x30] sm:$0xf]
    %v2136 = vld [vmem:[#allocation5 + $0x34] sm:$0xf]
    %v2137 = vld [vmem:[#allocation5 + $0x38] sm:$0xf]
    %v2138 = vld [vmem:[#allocation5 + $0x3c] sm:$0xf]
    %v2139 = vld [vmem:[%s4] sm:$0x1]
    %v2141 = vperm.slane %v2139, 0
    %v2159 = vunpack.c.l.b16 %v2123
    %v2160 = vunpack.c.l.b16 %v2124
    %v2161 = vunpack.c.l.b16 %v2125
    %v2162 = vunpack.c.l.b16 %v2126
    %v2163 = vunpack.c.l.b16 %v2127
    %v2164 = vunpack.c.l.b16 %v2128
    %v2165 = vunpack.c.l.b16 %v2129
    %v2166 = vunpack.c.l.b16 %v2130
    %v2167 = vunpack.c.l.b16 %v2131
    %v2168 = vunpack.c.l.b16 %v2132
    %v2169 = vunpack.c.l.b16 %v2133
    %v2170 = vunpack.c.l.b16 %v2134
    %v2171 = vunpack.c.l.b16 %v2135
    %v2172 = vunpack.c.l.b16 %v2136
    %v2173 = vunpack.c.l.b16 %v2137
    %v2174 = vunpack.c.l.b16 %v2138
    %v2175 = vpack.c.b16 %v2160, %v2159
    %v2176 = vpack.c.b16 %v2162, %v2161
    %v2177 = vpack.c.b16 %v2164, %v2163
    %v2178 = vpack.c.b16 %v2166, %v2165
    %v2179 = vpack.c.b16 %v2168, %v2167
    %v2180 = vpack.c.b16 %v2170, %v2169
    %v2181 = vpack.c.b16 %v2172, %v2171
    %v2182 = vpack.c.b16 %v2174, %v2173
    %2191 = vmatpush.bf16.msra.mxu0 %v2182
    %2192 = vmatpush.bf16.msra.mxu0 %v2181
    %2193 = vmatpush.bf16.msra.mxu0 %v2180
    %2194 = vmatpush.bf16.msra.mxu0 %v2179
    %2195 = vmatpush.bf16.msra.mxu0 %v2178
    %2196 = vmatpush.bf16.msra.mxu0 %v2177
    %2197 = vmatpush.bf16.msra.mxu0 %v2176
    %2198 = vmatpush.bf16.msra.mxu0 %v2175
    %2199 = vmatmul.bf16.gmra.mxu0 %v2121
    %v2200 = vpop.f32.mrf.mxu0
    %v2201 = vadd.f32 %v2141, %v2200
    %v2202 = vpop.f32.mrf.mxu0
    %v2203 = vadd.f32 %v2141, %v2202
    %2204 = vmatmul.bf16.gmra.mxu0 %v2122
    %v2205 = vpop.f32.mrf.mxu0
    %v2206 = vadd.f32 %v2141, %v2205
    %v2207 = vpop.f32.mrf.mxu0
    %v2208 = vadd.f32 %v2141, %v2207
    %2209 = vdwg.mxu0
    %v2210 = vadd.f32 %v2201, %v75
    %v2211 = vadd.f32 %v2203, %v76
    %v2212 = vadd.f32 %v2206, %v77
    %v2213 = vadd.f32 %v2208, %v78
    %2214 = vadd.xlane.f32.xlu0 %v2210
    %v2215 = vpop.xlane.xlu0 %2214
    %2216 = vadd.xlane.f32.xlu0 %v2211
    %v2217 = vpop.xlane.xlu0 %2216
    %2218 = vadd.xlane.f32.xlu0 %v2212
    %v2219 = vpop.xlane.xlu0 %2218
    %2220 = vadd.xlane.f32.xlu0 %v2213
    %v2221 = vpop.xlane.xlu0 %2220
    %v2222 = vrcp.pop 128.0
    %v2223 = vmul.f32 128.0, %v2222
    %v2224 = vsub.f32 1.0, %v2223
    %v2225 = vmul.f32 %v2222, %v2224
    %v2226 = vadd.f32 %v2222, %v2225
    %vm2227 = vweird.f32 %v2222
    %v2228 = vsel %vm2227, %v2222, %v2226
    %v2229 = vmul.f32 %v2215, %v2228
    %v2230 = vmul.f32 %v2217, %v2228
    %v2231 = vmul.f32 %v2219, %v2228
    %v2232 = vmul.f32 %v2221, %v2228
    %v2233 = vmul.f32 %v2210, %v2210
    %v2234 = vmul.f32 %v2211, %v2211
    %v2235 = vmul.f32 %v2212, %v2212
    %v2236 = vmul.f32 %v2213, %v2213
    %2237 = vadd.xlane.f32.xlu0 %v2233
    %v2238 = vpop.xlane.xlu0 %2237
    %2239 = vadd.xlane.f32.xlu0 %v2234
    %v2240 = vpop.xlane.xlu0 %2239
    %2241 = vadd.xlane.f32.xlu0 %v2235
    %v2242 = vpop.xlane.xlu0 %2241
    %2243 = vadd.xlane.f32.xlu0 %v2236
    %v2244 = vpop.xlane.xlu0 %2243
    %v2245 = vmul.f32 %v2238, %v2228
    %v2246 = vmul.f32 %v2240, %v2228
    %v2247 = vmul.f32 %v2242, %v2228
    %v2248 = vmul.f32 %v2244, %v2228
    %v2249 = vmul.f32 %v2229, %v2229
    %v2250 = vmul.f32 %v2230, %v2230
    %v2251 = vmul.f32 %v2231, %v2231
    %v2252 = vmul.f32 %v2232, %v2232
    %v2253 = vsub.f32 %v2245, %v2249
    %v2254 = vsub.f32 %v2246, %v2250
    %v2255 = vsub.f32 %v2247, %v2251
    %v2256 = vsub.f32 %v2248, %v2252
    %v2257 = vsub.f32 %v2210, %v2229
    %v2258 = vsub.f32 %v2211, %v2230
    %v2259 = vsub.f32 %v2212, %v2231
    %v2260 = vsub.f32 %v2213, %v2232
    %v2261 = vadd.f32 %v2253, 1e-05
    %v2262 = vadd.f32 %v2254, 1e-05
    %v2263 = vadd.f32 %v2255, 1e-05
    %v2264 = vadd.f32 %v2256, 1e-05
    %v2265 = vrsqrt.pop %v2261
    %v2266 = vmul.f32 %v2265, %v2261
    %v2267 = vmul.f32 %v2266, %v2265
    %v2268 = vmul.f32 0.5, %v2267
    %v2269 = vsub.f32 1.5, %v2268
    %v2270 = vmul.f32 %v2265, %v2269
    %vm2271 = vweird.f32 %v2261
    %vm2272 = vweird.f32 %v2265
    %vm2273 = vmor %vm2271, %vm2272
    %v2274 = vsel %vm2273, %v2265, %v2270
    %v2275 = vrsqrt.pop %v2262
    %v2276 = vmul.f32 %v2275, %v2262
    %v2277 = vmul.f32 %v2276, %v2275
    %v2278 = vmul.f32 0.5, %v2277
    %v2279 = vsub.f32 1.5, %v2278
    %v2280 = vmul.f32 %v2275, %v2279
    %vm2281 = vweird.f32 %v2262
    %vm2282 = vweird.f32 %v2275
    %vm2283 = vmor %vm2281, %vm2282
    %v2284 = vsel %vm2283, %v2275, %v2280
    %v2285 = vrsqrt.pop %v2263
    %v2286 = vmul.f32 %v2285, %v2263
    %v2287 = vmul.f32 %v2286, %v2285
    %v2288 = vmul.f32 0.5, %v2287
    %v2289 = vsub.f32 1.5, %v2288
    %v2290 = vmul.f32 %v2285, %v2289
    %vm2291 = vweird.f32 %v2263
    %vm2292 = vweird.f32 %v2285
    %vm2293 = vmor %vm2291, %vm2292
    %v2294 = vsel %vm2293, %v2285, %v2290
    %v2295 = vrsqrt.pop %v2264
    %v2296 = vmul.f32 %v2295, %v2264
    %v2297 = vmul.f32 %v2296, %v2295
    %v2298 = vmul.f32 0.5, %v2297
    %v2299 = vsub.f32 1.5, %v2298
    %v2300 = vmul.f32 %v2295, %v2299
    %vm2301 = vweird.f32 %v2264
    %vm2302 = vweird.f32 %v2295
    %vm2303 = vmor %vm2301, %vm2302
    %v2304 = vsel %vm2303, %v2295, %v2300
    %v2305 = vmul.f32 %v2257, %v2274
    %v2306 = vmul.f32 %v2258, %v2284
    %v2307 = vmul.f32 %v2259, %v2294
    %v2308 = vmul.f32 %v2260, %v2304
    %v2309 = vld [vmem:[%s5] sm:$0x1]
    %v2311 = vperm.slane %v2309, 0
    %v2313 = vmul.f32 %v2305, %v2311
    %v2314 = vmul.f32 %v2306, %v2311
    %v2315 = vmul.f32 %v2307, %v2311
    %v2316 = vmul.f32 %v2308, %v2311
    %v2317 = vld [vmem:[#allocation7] sm:$0x1]
    %v2319 = vperm.slane %v2317, 0
    %v2321 = vadd.f32 %v2313, %v2319
    %v2322 = vadd.f32 %v2314, %v2319
    %v2323 = vadd.f32 %v2315, %v2319
    %v2324 = vadd.f32 %v2316, %v2319
    %2325 = vst [vmem:[#allocation8] sm:$0xff] %v2321
    %2326 = vst [vmem:[#allocation8 + $0x8] sm:$0xff] %v2322
    %2327 = vst [vmem:[#allocation8 + $0x10] sm:$0xff] %v2323
    %2328 = vst [vmem:[#allocation8 + $0x18] sm:$0xff] %v2324
    // Predicated region
    $region46: #{multi_head_attention.1} parent=1 // pred_check
      _
    $region47: #{multi_head_attention.1} parent=1 // pred_check_branch
      %2330 = sbr.rel (0) target = $region49
    $region48: #{multi_head_attention.1} parent=1 // pred_region
      %2332 = vsyncadd [#allocation4], 0
      %s2333 = sshll.u32 [#allocation8], 4
      %s2334 = int_to_ptr.vmem [resolvable:$true] %s2333
      %s2335 = sshll.u32 %s8, 4
      %s2336 = int_to_ptr.hbm [resolvable:$true] %s2335
      %2341 = dma.vmem_to_hbm [thread:$0]  %s2334, 512, %s2336, [#allocation4], 128, 128, 8
    $region49: #{multi_head_attention.1} parent=1 // pred_fallthru
      _
    // Predicated region
    $region50: #{multi_head_attention.1} parent=1 // pred_check
      _
    $region51: #{multi_head_attention.1} parent=1 // pred_check_branch
      %2343 = sbr.rel (0) target = $region53
    $region52: #{multi_head_attention.1} parent=1 // pred_region
      %2345 = dma.done [#allocation4], 512
    $region53: #{multi_head_attention.1} parent=1 // pred_fallthru
      _
    %2346 = vsyncpa [#allocation3], 1
    %2347 = vsyncpa [#allocation6], 1
    %2348 = vsyncpa [#allocation4], 1

</llo_original>
